<compile_context>
chip_gen: v6e
topology: v6e:2x2x1
jax: 0.10.0
libtpu: 0.0.40
codegen_flags: <defaults>
</compile_context>

<pallas_src>
import functools

import jax
import jax.numpy as jnp
from jax.experimental import pallas as pl
from jax.experimental.pallas import tpu as pltpu

LANES = 128
ROW_TARGET = 1024  # fused rows (heads_blk * blk_r) aimed per tile (~512 KiB f32/stream)


def _rope2d_kernel(ll_ref, tbl_ref, q_ref, k_ref, q_out, k_out):
    # Shapes per grid step (b, h, r):
    #   ll_ref : (1, blk_R, 2P)         lon (cols 0..P-1) / lat (cols P..2P-1), f32
    #   tbl_ref: (heads_blk, 2P, 128)   per-head signed packed-lane frequency table, f32
    #   q_ref, k_ref, q_out, k_out: (1, heads_blk, blk_R, 128)
    ll = ll_ref[0]                                    # (blk_R, 2P), f32
    heads_blk = tbl_ref.shape[0]
    blk_r = ll.shape[0]

    # Constant even-lane mask, hoisted out of the head loop (trace-time constant).
    lane = jax.lax.broadcasted_iota(jnp.int32, (blk_r, LANES), 1)
    even = (lane % 2) == 0

    for h in range(heads_blk):
        # phase[r, l] = sign(l) * (lon[n(r,l)] * fx[t(l)] + lat[n(r,l)] * fy[t(l)])
        # Single small MXU matmul (vector-extended slot) instead of 2*2P VALU MACs.
        phase = jnp.dot(ll, tbl_ref[h], preferred_element_type=jnp.float32)
        cos_p = jnp.cos(phase)                        # cos is even -> cos(|phase|)
        sin_p = jnp.sin(phase)                        # == sign(l) * sin(|phase|)
        # TODO(synk): on v7x (3.2 TB/s HBM) the generic sin/cos lowering can become
        # the binding VALU load; a range-limited polynomial or half-lane-width
        # evaluation + interleave would trim it — verify with a bundle dump first.

        for x_ref, o_ref in ((q_ref, q_out), (k_ref, k_out)):
            x = x_ref[0, h].astype(jnp.float32)       # (blk_R, 128)
            # Pair swap x[:, l ^ 1]: pltpu.roll matches jnp.roll, i.e.
            # roll(x, +1)[l] = x[l-1] and roll(x, 127)[l] = x[l+1].
            swapped = jnp.where(even,
                                pltpu.roll(x, LANES - 1, 1),
                                pltpu.roll(x, 1, 1))
            o_ref[0, h] = (x * cos_p + swapped * sin_p).astype(o_ref.dtype)


def _largest_divisor_leq(n: int, cap: int) -> int:
    cap = max(1, min(n, cap))
    for c in range(cap, 0, -1):
        if n % c == 0:
            return c
    return 1


@functools.partial(jax.jit,
                   static_argnames=("spherical_correction", "donate_qk", "row_target"))
def rope2d_mixed(q, k, coords, freq, spherical_correction=False,
                 donate_qk=True, row_target=ROW_TARGET):
    """q, k: [B, heads, H, W, d_head]; coords: [B, H, W, 2]; freq: [1, heads, half, 2]."""
    B, heads, H, W, d = q.shape
    assert k.shape == q.shape
    assert d % 2 == 0, "d_head must be even"
    assert LANES % d == 0, "d_head must divide 128 for the packed-lane kernel"
    # TODO(synk): fall back to an (N, d)-tiled kernel for d_head not dividing 128.
    P = LANES // d
    N = H * W
    assert N % P == 0, "H*W must be a multiple of 128 // d_head"
    R = (N * d) // LANES                              # packed 128-lane rows per (b, head)
    half = d // 2
    dtype = q.dtype

    # ---- tiny trace-time prep (O(B*N) and O(heads*128), always f32) ----
    lat = (coords[..., 0] * 20.0).astype(jnp.float32)
    lon = (coords[..., 1] * 20.0).astype(jnp.float32)
    if spherical_correction:
        lon = lon * jnp.cos(lat * (jnp.pi / 180.0))
    ll = jnp.concatenate(
        [lon.reshape(B, R, P), lat.reshape(B, R, P)], axis=-1)          # (B, R, 2P)

    fr = freq.reshape(heads, half, 2).astype(jnp.float32)
    lane = jnp.arange(LANES)
    t_of = (lane % d) // 2                                              # channel pair / lane
    sign = jnp.where(lane % 2 == 0, -1.0, 1.0).astype(jnp.float32)      # even lane -> -sin
    fx_l = fr[:, :, 0][:, t_of] * sign[None, :]                         # (heads, 128)
    fy_l = fr[:, :, 1][:, t_of] * sign[None, :]
    onehot = (lane[None, :] // d == jnp.arange(P)[:, None]).astype(jnp.float32)  # (P,128)
    table = jnp.concatenate(
        [onehot[None] * fx_l[:, None, :], onehot[None] * fy_l[:, None, :]],
        axis=1)                                                         # (heads, 2P, 128)

    # ---- free contiguous reshapes into the packed-lane layout ----
    q4 = q.reshape(B, heads, R, LANES)
    k4 = k.reshape(B, heads, R, LANES)

    # ---- tiling: fixed row target, cdiv grid, head fusion for small R ----
    if R >= row_target:
        blk_r = row_target                          # ragged last block is masked by Pallas
        heads_blk = 1
    else:
        blk_r = R
        heads_blk = _largest_divisor_leq(heads, row_target // max(R, 1))
    # v7x has 2 TensorCores: keep at least two parallel grid steps when possible.
    if B * (heads // heads_blk) * pl.cdiv(R, blk_r) < 2 and heads_blk > 1:
        heads_blk = _largest_divisor_leq(heads, heads_blk // 2)
    grid = (B, heads // heads_blk, pl.cdiv(R, blk_r))

    qk_spec = pl.BlockSpec((1, heads_blk, blk_r, LANES), lambda b, h, r: (b, h, r, 0))
    ll_spec = pl.BlockSpec((1, blk_r, 2 * P), lambda b, h, r: (b, r, 0))
    tb_spec = pl.BlockSpec((heads_blk, 2 * P, LANES), lambda b, h, r: (h, 0, 0))
    out_sds = jax.ShapeDtypeStruct((B, heads, R, LANES), dtype)

    itemsize = jnp.dtype(dtype).itemsize
    cost = pl.CostEstimate(
        flops=int(q4.size * (4 * P + 12)),            # phase matmul + both rotations (rough)
        transcendentals=int(2 * q4.size),             # cos + sin per packed lane
        bytes_accessed=int(4 * q4.size * itemsize + ll.size * 4 + table.size * 4),
    )

    extra = {}
    if donate_qk:
        # RoPE is applied destructively in the reference module; alias q4->q_out, k4->k_out.
        extra["input_output_aliases"] = {2: 0, 3: 1}

    q2, k2 = pl.pallas_call(
        _rope2d_kernel,
        out_shape=(out_sds, out_sds),
        grid_spec=pltpu.PrefetchScalarGridSpec(
            num_scalar_prefetch=0,
            grid=grid,
            in_specs=[ll_spec, tb_spec, qk_spec, qk_spec],
            out_specs=[qk_spec, qk_spec],
        ),
        compiler_params=pltpu.CompilerParams(
            dimension_semantics=("parallel", "parallel", "parallel"),
            vmem_limit_bytes=32 * 1024 * 1024,
        ),
        cost_estimate=cost,
        **extra,
    )(ll, table, q4, k4)

    return q2.reshape(q.shape), k2.reshape(k.shape)


def rope2d_mixed_ref(q, k, coords, freq, spherical_correction=False):
    """Pure-JAX reference mirroring the PyTorch forward exactly."""
    lat = coords[..., 0] * 20.0
    lon = coords[..., 1] * 20.0
    if spherical_correction:
        lon = lon * jnp.cos(lat * jnp.pi / 180.0)
    fx = freq[..., 0][..., None, None]                 # [1, heads, half, 1, 1]
    fy = freq[..., 1][..., None, None]
    lon_ = lon[:, None, None, :, :]                    # [B, 1, 1, H, W]
    lat_ = lat[:, None, None, :, :]
    phase = fx * lon_ + fy * lat_                      # [B, heads, half, H, W]
    cos = jnp.cos(phase).transpose(0, 1, 3, 4, 2)      # [B, heads, H, W, half]
    sin = jnp.sin(phase).transpose(0, 1, 3, 4, 2)

    def rot(x):
        xe, xo = x[..., 0::2], x[..., 1::2]
        xe2 = xe * cos - xo * sin
        xo2 = xo * cos + xe * sin
        return jnp.stack([xe2, xo2], axis=-1).reshape(x.shape)

    return rot(q), rot(k)


if __name__ == "__main__":
    key = jax.random.PRNGKey(0)

    # (B, heads, d_head, H, W, row_target) — exercise head-fused, chunked-R and
    # ragged-last-block paths of the tiler.
    configs = [
        (2, 4, 32, 8, 8, ROW_TARGET),   # R=16 < target: heads fused, grid (2,1,1)
        (2, 4, 32, 8, 8, 8),            # R=16, blk_r=8: chunked rows, grid (2,4,2)
        (1, 4, 32, 5, 8, 8),            # R=10, blk_r=8: ragged last row block
    ]

    for cfg_i, (B, heads, d_head, H, W, row_target) in enumerate(configs):
        k1, k2, k3, k4 = jax.random.split(jax.random.fold_in(key, cfg_i), 4)
        half = d_head // 2
        q = jax.random.normal(k1, (B, heads, H, W, d_head), dtype=jnp.float32)
        kk = jax.random.normal(k2, (B, heads, H, W, d_head), dtype=jnp.float32)
        coords = jax.random.normal(k3, (B, H, W, 2), dtype=jnp.float32)
        # nn.init.normal_(freq, std=0.02), shape [1, heads, half, 2]
        freq = 0.02 * jax.random.normal(k4, (1, heads, half, 2), dtype=jnp.float32)

        for sph in (False, True):
            q_out, k_out = rope2d_mixed(q, kk, coords, freq,
                                        spherical_correction=sph,
                                        row_target=row_target)
            jax.block_until_ready((q_out, k_out))

            q_ref, k_ref = rope2d_mixed_ref(q, kk, coords, freq, spherical_correction=sph)
            assert q_out.shape == q.shape and k_out.shape == kk.shape
            assert jnp.allclose(q_out, q_ref, atol=2e-5, rtol=2e-5), \
                f"q mismatch (cfg={cfg_i}, sph={sph})"
            assert jnp.allclose(k_out, k_ref, atol=2e-5, rtol=2e-5), \
                f"k mismatch (cfg={cfg_i}, sph={sph})"

    print("KERNEL_OK")
</pallas_src>

<mosaic_0001>
module attributes {stable_mosaic.version = 11 : i64} {
  func.func @_rope2d_kernel(%arg0: i32, %arg1: i32, %arg2: i32, %arg3: memref<1x16x8xf32, #tpu.memory_space<vmem>>, %arg4: memref<4x8x128xf32, #tpu.memory_space<vmem>>, %arg5: memref<1x4x16x128xf32, #tpu.memory_space<vmem>>, %arg6: memref<1x4x16x128xf32, #tpu.memory_space<vmem>>, %arg7: memref<1x4x16x128xf32, #tpu.memory_space<vmem>>, %arg8: memref<1x4x16x128xf32, #tpu.memory_space<vmem>>) attributes {dimension_semantics = [#tpu.dimension_semantics<parallel>, #tpu.dimension_semantics<parallel>, #tpu.dimension_semantics<parallel>], iteration_bounds = array<i64: 2, 1, 1>, scalar_prefetch = 0 : i64, scratch_operands = 0 : i64, tpu.core_type = #tpu.core_type<tc>, window_params = [{transform_indices = @transform_0, window_bounds = array<i64: 1, 16, 8>}, {transform_indices = @transform_1, window_bounds = array<i64: 4, 8, 128>}, {transform_indices = @transform_2, window_bounds = array<i64: 1, 4, 16, 128>}, {transform_indices = @transform_3, window_bounds = array<i64: 1, 4, 16, 128>}, {transform_indices = @transform_4, window_bounds = array<i64: 1, 4, 16, 128>}, {transform_indices = @transform_5, window_bounds = array<i64: 1, 4, 16, 128>}]} {
    %c0 = arith.constant 0 : index
    %c0_0 = arith.constant 0 : index
    %c0_1 = arith.constant 0 : index
    %0 = vector.load %arg3[%c0, %c0_0, %c0_1] : memref<1x16x8xf32, #tpu.memory_space<vmem>>, vector<1x16x8xf32>
    %1 = vector.shape_cast %0 : vector<1x16x8xf32> to vector<16x8xf32>
    %2 = tpu.iota {dimensions = array<i32: 1>} : vector<16x128xi32>
    %c2_i32 = arith.constant 2 : i32
    %c0_i32 = arith.constant 0 : i32
    %3 = arith.cmpi eq, %c2_i32, %c0_i32 : i32
    %c1_i32 = arith.constant 1 : i32
    %4 = arith.select %3, %c1_i32, %c2_i32 : i32
    %5 = vector.broadcast %4 : i32 to vector<16x128xi32>
    %6 = arith.remsi %2, %5 : vector<16x128xi32>
    %c0_i32_2 = arith.constant 0 : i32
    %7 = vector.broadcast %c0_i32_2 : i32 to vector<16x128xi32>
    %8 = arith.cmpi ne, %6, %7 : vector<16x128xi32>
    %c0_i32_3 = arith.constant 0 : i32
    %9 = vector.broadcast %c0_i32_3 : i32 to vector<16x128xi32>
    %10 = arith.cmpi slt, %6, %9 : vector<16x128xi32>
    %c0_i32_4 = arith.constant 0 : i32
    %11 = arith.cmpi slt, %4, %c0_i32_4 : i32
    %12 = vector.broadcast %11 : i1 to vector<16x128xi1>
    %13 = vector.broadcast %12 : vector<16x128xi1> to vector<16x128xi1>
    %14 = arith.xori %10, %13 : vector<16x128xi1>
    %15 = arith.andi %14, %8 : vector<16x128xi1>
    %16 = vector.broadcast %4 : i32 to vector<16x128xi32>
    %17 = arith.addi %6, %16 : vector<16x128xi32>
    %18 = arith.select %15, %17, %6 : vector<16x128xi1>, vector<16x128xi32>
    %c0_i32_5 = arith.constant 0 : i32
    %19 = vector.broadcast %c0_i32_5 : i32 to vector<16x128xi32>
    %20 = arith.cmpi eq, %18, %19 : vector<16x128xi32>
    %c0_6 = arith.constant 0 : index
    %c0_7 = arith.constant 0 : index
    %c0_8 = arith.constant 0 : index
    %21 = vector.load %arg4[%c0_6, %c0_7, %c0_8] : memref<4x8x128xf32, #tpu.memory_space<vmem>>, vector<1x8x128xf32>
    %22 = vector.shape_cast %21 : vector<1x8x128xf32> to vector<8x128xf32>
    %cst = arith.constant dense<0.000000e+00> : vector<16x128xf32>
    %23 = tpu.matmul %1, %22, %cst {dimension_numbers = #tpu.dot_dimension_numbers<[1], [0], [0], [1], [0, 0, 1, 1], [], []>} : vector<16x8xf32>, vector<8x128xf32>, vector<16x128xf32> -> vector<16x128xf32>
    %24 = math.cos %23 : vector<16x128xf32>
    %25 = math.sin %23 : vector<16x128xf32>
    %c0_9 = arith.constant 0 : index
    %c0_10 = arith.constant 0 : index
    %c0_11 = arith.constant 0 : index
    %c0_12 = arith.constant 0 : index
    %26 = vector.load %arg5[%c0_9, %c0_10, %c0_11, %c0_12] : memref<1x4x16x128xf32, #tpu.memory_space<vmem>>, vector<1x1x16x128xf32>
    %27 = vector.shape_cast %26 : vector<1x1x16x128xf32> to vector<16x128xf32>
    %c127_i32 = arith.constant 127 : i32
    %28 = tpu.dynamic_rotate %27 by %c127_i32 dim 1 : vector<16x128xf32>, i32 -> vector<16x128xf32>
    %c1_i32_13 = arith.constant 1 : i32
    %29 = tpu.dynamic_rotate %27 by %c1_i32_13 dim 1 : vector<16x128xf32>, i32 -> vector<16x128xf32>
    %30 = arith.select %20, %28, %29 : vector<16x128xi1>, vector<16x128xf32>
    %31 = arith.mulf %27, %24 : vector<16x128xf32>
    %32 = arith.mulf %30, %25 : vector<16x128xf32>
    %33 = arith.addf %31, %32 : vector<16x128xf32>
    %c0_14 = arith.constant 0 : index
    %c0_15 = arith.constant 0 : index
    %c0_16 = arith.constant 0 : index
    %c0_17 = arith.constant 0 : index
    %34 = vector.load %arg7[%c0_14, %c0_15, %c0_16, %c0_17] : memref<1x4x16x128xf32, #tpu.memory_space<vmem>>, vector<1x1x16x128xf32>
    %35 = vector.shape_cast %34 : vector<1x1x16x128xf32> to vector<16x128xf32>
    %36 = vector.shape_cast %33 : vector<16x128xf32> to vector<1x1x16x128xf32>
    tpu.vector_store %arg7[%c0_14, %c0_15, %c0_16, %c0_17], %36 {strides = array<i32>} : memref<1x4x16x128xf32, #tpu.memory_space<vmem>>, vector<1x1x16x128xf32>,
    %c0_18 = arith.constant 0 : index
    %c0_19 = arith.constant 0 : index
    %c0_20 = arith.constant 0 : index
    %c0_21 = arith.constant 0 : index
    %37 = vector.load %arg6[%c0_18, %c0_19, %c0_20, %c0_21] : memref<1x4x16x128xf32, #tpu.memory_space<vmem>>, vector<1x1x16x128xf32>
    %38 = vector.shape_cast %37 : vector<1x1x16x128xf32> to vector<16x128xf32>
    %c127_i32_22 = arith.constant 127 : i32
    %39 = tpu.dynamic_rotate %38 by %c127_i32_22 dim 1 : vector<16x128xf32>, i32 -> vector<16x128xf32>
    %c1_i32_23 = arith.constant 1 : i32
    %40 = tpu.dynamic_rotate %38 by %c1_i32_23 dim 1 : vector<16x128xf32>, i32 -> vector<16x128xf32>
    %41 = arith.select %20, %39, %40 : vector<16x128xi1>, vector<16x128xf32>
    %42 = arith.mulf %38, %24 : vector<16x128xf32>
    %43 = arith.mulf %41, %25 : vector<16x128xf32>
    %44 = arith.addf %42, %43 : vector<16x128xf32>
    %c0_24 = arith.constant 0 : index
    %c0_25 = arith.constant 0 : index
    %c0_26 = arith.constant 0 : index
    %c0_27 = arith.constant 0 : index
    %45 = vector.load %arg8[%c0_24, %c0_25, %c0_26, %c0_27] : memref<1x4x16x128xf32, #tpu.memory_space<vmem>>, vector<1x1x16x128xf32>
    %46 = vector.shape_cast %45 : vector<1x1x16x128xf32> to vector<16x128xf32>
    %47 = vector.shape_cast %44 : vector<16x128xf32> to vector<1x1x16x128xf32>
    tpu.vector_store %arg8[%c0_24, %c0_25, %c0_26, %c0_27], %47 {strides = array<i32>} : memref<1x4x16x128xf32, #tpu.memory_space<vmem>>, vector<1x1x16x128xf32>,
    %c1 = arith.constant 1 : index
    %c0_28 = arith.constant 0 : index
    %c0_29 = arith.constant 0 : index
    %48 = vector.load %arg4[%c1, %c0_28, %c0_29] : memref<4x8x128xf32, #tpu.memory_space<vmem>>, vector<1x8x128xf32>
    %49 = vector.shape_cast %48 : vector<1x8x128xf32> to vector<8x128xf32>
    %cst_30 = arith.constant dense<0.000000e+00> : vector<16x128xf32>
    %50 = tpu.matmul %1, %49, %cst_30 {dimension_numbers = #tpu.dot_dimension_numbers<[1], [0], [0], [1], [0, 0, 1, 1], [], []>} : vector<16x8xf32>, vector<8x128xf32>, vector<16x128xf32> -> vector<16x128xf32>
    %51 = math.cos %50 : vector<16x128xf32>
    %52 = math.sin %50 : vector<16x128xf32>
    %c0_31 = arith.constant 0 : index
    %c1_32 = arith.constant 1 : index
    %c0_33 = arith.constant 0 : index
    %c0_34 = arith.constant 0 : index
    %53 = vector.load %arg5[%c0_31, %c1_32, %c0_33, %c0_34] : memref<1x4x16x128xf32, #tpu.memory_space<vmem>>, vector<1x1x16x128xf32>
    %54 = vector.shape_cast %53 : vector<1x1x16x128xf32> to vector<16x128xf32>
    %c127_i32_35 = arith.constant 127 : i32
    %55 = tpu.dynamic_rotate %54 by %c127_i32_35 dim 1 : vector<16x128xf32>, i32 -> vector<16x128xf32>
    %c1_i32_36 = arith.constant 1 : i32
    %56 = tpu.dynamic_rotate %54 by %c1_i32_36 dim 1 : vector<16x128xf32>, i32 -> vector<16x128xf32>
    %57 = arith.select %20, %55, %56 : vector<16x128xi1>, vector<16x128xf32>
    %58 = arith.mulf %54, %51 : vector<16x128xf32>
    %59 = arith.mulf %57, %52 : vector<16x128xf32>
    %60 = arith.addf %58, %59 : vector<16x128xf32>
    %c0_37 = arith.constant 0 : index
    %c1_38 = arith.constant 1 : index
    %c0_39 = arith.constant 0 : index
    %c0_40 = arith.constant 0 : index
    %61 = vector.load %arg7[%c0_37, %c1_38, %c0_39, %c0_40] : memref<1x4x16x128xf32, #tpu.memory_space<vmem>>, vector<1x1x16x128xf32>
    %62 = vector.shape_cast %61 : vector<1x1x16x128xf32> to vector<16x128xf32>
    %63 = vector.shape_cast %60 : vector<16x128xf32> to vector<1x1x16x128xf32>
    tpu.vector_store %arg7[%c0_37, %c1_38, %c0_39, %c0_40], %63 {strides = array<i32>} : memref<1x4x16x128xf32, #tpu.memory_space<vmem>>, vector<1x1x16x128xf32>,
    %c0_41 = arith.constant 0 : index
    %c1_42 = arith.constant 1 : index
    %c0_43 = arith.constant 0 : index
    %c0_44 = arith.constant 0 : index
    %64 = vector.load %arg6[%c0_41, %c1_42, %c0_43, %c0_44] : memref<1x4x16x128xf32, #tpu.memory_space<vmem>>, vector<1x1x16x128xf32>
    %65 = vector.shape_cast %64 : vector<1x1x16x128xf32> to vector<16x128xf32>
    %c127_i32_45 = arith.constant 127 : i32
    %66 = tpu.dynamic_rotate %65 by %c127_i32_45 dim 1 : vector<16x128xf32>, i32 -> vector<16x128xf32>
    %c1_i32_46 = arith.constant 1 : i32
    %67 = tpu.dynamic_rotate %65 by %c1_i32_46 dim 1 : vector<16x128xf32>, i32 -> vector<16x128xf32>
    %68 = arith.select %20, %66, %67 : vector<16x128xi1>, vector<16x128xf32>
    %69 = arith.mulf %65, %51 : vector<16x128xf32>
    %70 = arith.mulf %68, %52 : vector<16x128xf32>
    %71 = arith.addf %69, %70 : vector<16x128xf32>
    %c0_47 = arith.constant 0 : index
    %c1_48 = arith.constant 1 : index
    %c0_49 = arith.constant 0 : index
    %c0_50 = arith.constant 0 : index
    %72 = vector.load %arg8[%c0_47, %c1_48, %c0_49, %c0_50] : memref<1x4x16x128xf32, #tpu.memory_space<vmem>>, vector<1x1x16x128xf32>
    %73 = vector.shape_cast %72 : vector<1x1x16x128xf32> to vector<16x128xf32>
    %74 = vector.shape_cast %71 : vector<16x128xf32> to vector<1x1x16x128xf32>
    tpu.vector_store %arg8[%c0_47, %c1_48, %c0_49, %c0_50], %74 {strides = array<i32>} : memref<1x4x16x128xf32, #tpu.memory_space<vmem>>, vector<1x1x16x128xf32>,
    %c2 = arith.constant 2 : index
    %c0_51 = arith.constant 0 : index
    %c0_52 = arith.constant 0 : index
    %75 = vector.load %arg4[%c2, %c0_51, %c0_52] : memref<4x8x128xf32, #tpu.memory_space<vmem>>, vector<1x8x128xf32>
    %76 = vector.shape_cast %75 : vector<1x8x128xf32> to vector<8x128xf32>
    %cst_53 = arith.constant dense<0.000000e+00> : vector<16x128xf32>
    %77 = tpu.matmul %1, %76, %cst_53 {dimension_numbers = #tpu.dot_dimension_numbers<[1], [0], [0], [1], [0, 0, 1, 1], [], []>} : vector<16x8xf32>, vector<8x128xf32>, vector<16x128xf32> -> vector<16x128xf32>
    %78 = math.cos %77 : vector<16x128xf32>
    %79 = math.sin %77 : vector<16x128xf32>
    %c0_54 = arith.constant 0 : index
    %c2_55 = arith.constant 2 : index
    %c0_56 = arith.constant 0 : index
    %c0_57 = arith.constant 0 : index
    %80 = vector.load %arg5[%c0_54, %c2_55, %c0_56, %c0_57] : memref<1x4x16x128xf32, #tpu.memory_space<vmem>>, vector<1x1x16x128xf32>
    %81 = vector.shape_cast %80 : vector<1x1x16x128xf32> to vector<16x128xf32>
    %c127_i32_58 = arith.constant 127 : i32
    %82 = tpu.dynamic_rotate %81 by %c127_i32_58 dim 1 : vector<16x128xf32>, i32 -> vector<16x128xf32>
    %c1_i32_59 = arith.constant 1 : i32
    %83 = tpu.dynamic_rotate %81 by %c1_i32_59 dim 1 : vector<16x128xf32>, i32 -> vector<16x128xf32>
    %84 = arith.select %20, %82, %83 : vector<16x128xi1>, vector<16x128xf32>
    %85 = arith.mulf %81, %78 : vector<16x128xf32>
    %86 = arith.mulf %84, %79 : vector<16x128xf32>
    %87 = arith.addf %85, %86 : vector<16x128xf32>
    %c0_60 = arith.constant 0 : index
    %c2_61 = arith.constant 2 : index
    %c0_62 = arith.constant 0 : index
    %c0_63 = arith.constant 0 : index
    %88 = vector.load %arg7[%c0_60, %c2_61, %c0_62, %c0_63] : memref<1x4x16x128xf32, #tpu.memory_space<vmem>>, vector<1x1x16x128xf32>
    %89 = vector.shape_cast %88 : vector<1x1x16x128xf32> to vector<16x128xf32>
    %90 = vector.shape_cast %87 : vector<16x128xf32> to vector<1x1x16x128xf32>
    tpu.vector_store %arg7[%c0_60, %c2_61, %c0_62, %c0_63], %90 {strides = array<i32>} : memref<1x4x16x128xf32, #tpu.memory_space<vmem>>, vector<1x1x16x128xf32>,
    %c0_64 = arith.constant 0 : index
    %c2_65 = arith.constant 2 : index
    %c0_66 = arith.constant 0 : index
    %c0_67 = arith.constant 0 : index
    %91 = vector.load %arg6[%c0_64, %c2_65, %c0_66, %c0_67] : memref<1x4x16x128xf32, #tpu.memory_space<vmem>>, vector<1x1x16x128xf32>
    %92 = vector.shape_cast %91 : vector<1x1x16x128xf32> to vector<16x128xf32>
    %c127_i32_68 = arith.constant 127 : i32
    %93 = tpu.dynamic_rotate %92 by %c127_i32_68 dim 1 : vector<16x128xf32>, i32 -> vector<16x128xf32>
    %c1_i32_69 = arith.constant 1 : i32
    %94 = tpu.dynamic_rotate %92 by %c1_i32_69 dim 1 : vector<16x128xf32>, i32 -> vector<16x128xf32>
    %95 = arith.select %20, %93, %94 : vector<16x128xi1>, vector<16x128xf32>
    %96 = arith.mulf %92, %78 : vector<16x128xf32>
    %97 = arith.mulf %95, %79 : vector<16x128xf32>
    %98 = arith.addf %96, %97 : vector<16x128xf32>
    %c0_70 = arith.constant 0 : index
    %c2_71 = arith.constant 2 : index
    %c0_72 = arith.constant 0 : index
    %c0_73 = arith.constant 0 : index
    %99 = vector.load %arg8[%c0_70, %c2_71, %c0_72, %c0_73] : memref<1x4x16x128xf32, #tpu.memory_space<vmem>>, vector<1x1x16x128xf32>
    %100 = vector.shape_cast %99 : vector<1x1x16x128xf32> to vector<16x128xf32>
    %101 = vector.shape_cast %98 : vector<16x128xf32> to vector<1x1x16x128xf32>
    tpu.vector_store %arg8[%c0_70, %c2_71, %c0_72, %c0_73], %101 {strides = array<i32>} : memref<1x4x16x128xf32, #tpu.memory_space<vmem>>, vector<1x1x16x128xf32>,
    %c3 = arith.constant 3 : index
    %c0_74 = arith.constant 0 : index
    %c0_75 = arith.constant 0 : index
    %102 = vector.load %arg4[%c3, %c0_74, %c0_75] : memref<4x8x128xf32, #tpu.memory_space<vmem>>, vector<1x8x128xf32>
    %103 = vector.shape_cast %102 : vector<1x8x128xf32> to vector<8x128xf32>
    %cst_76 = arith.constant dense<0.000000e+00> : vector<16x128xf32>
    %104 = tpu.matmul %1, %103, %cst_76 {dimension_numbers = #tpu.dot_dimension_numbers<[1], [0], [0], [1], [0, 0, 1, 1], [], []>} : vector<16x8xf32>, vector<8x128xf32>, vector<16x128xf32> -> vector<16x128xf32>
    %105 = math.cos %104 : vector<16x128xf32>
    %106 = math.sin %104 : vector<16x128xf32>
    %c0_77 = arith.constant 0 : index
    %c3_78 = arith.constant 3 : index
    %c0_79 = arith.constant 0 : index
    %c0_80 = arith.constant 0 : index
    %107 = vector.load %arg5[%c0_77, %c3_78, %c0_79, %c0_80] : memref<1x4x16x128xf32, #tpu.memory_space<vmem>>, vector<1x1x16x128xf32>
    %108 = vector.shape_cast %107 : vector<1x1x16x128xf32> to vector<16x128xf32>
    %c127_i32_81 = arith.constant 127 : i32
    %109 = tpu.dynamic_rotate %108 by %c127_i32_81 dim 1 : vector<16x128xf32>, i32 -> vector<16x128xf32>
    %c1_i32_82 = arith.constant 1 : i32
    %110 = tpu.dynamic_rotate %108 by %c1_i32_82 dim 1 : vector<16x128xf32>, i32 -> vector<16x128xf32>
    %111 = arith.select %20, %109, %110 : vector<16x128xi1>, vector<16x128xf32>
    %112 = arith.mulf %108, %105 : vector<16x128xf32>
    %113 = arith.mulf %111, %106 : vector<16x128xf32>
    %114 = arith.addf %112, %113 : vector<16x128xf32>
    %c0_83 = arith.constant 0 : index
    %c3_84 = arith.constant 3 : index
    %c0_85 = arith.constant 0 : index
    %c0_86 = arith.constant 0 : index
    %115 = vector.load %arg7[%c0_83, %c3_84, %c0_85, %c0_86] : memref<1x4x16x128xf32, #tpu.memory_space<vmem>>, vector<1x1x16x128xf32>
    %116 = vector.shape_cast %115 : vector<1x1x16x128xf32> to vector<16x128xf32>
    %117 = vector.shape_cast %114 : vector<16x128xf32> to vector<1x1x16x128xf32>
    tpu.vector_store %arg7[%c0_83, %c3_84, %c0_85, %c0_86], %117 {strides = array<i32>} : memref<1x4x16x128xf32, #tpu.memory_space<vmem>>, vector<1x1x16x128xf32>,
    %c0_87 = arith.constant 0 : index
    %c3_88 = arith.constant 3 : index
    %c0_89 = arith.constant 0 : index
    %c0_90 = arith.constant 0 : index
    %118 = vector.load %arg6[%c0_87, %c3_88, %c0_89, %c0_90] : memref<1x4x16x128xf32, #tpu.memory_space<vmem>>, vector<1x1x16x128xf32>
    %119 = vector.shape_cast %118 : vector<1x1x16x128xf32> to vector<16x128xf32>
    %c127_i32_91 = arith.constant 127 : i32
    %120 = tpu.dynamic_rotate %119 by %c127_i32_91 dim 1 : vector<16x128xf32>, i32 -> vector<16x128xf32>
    %c1_i32_92 = arith.constant 1 : i32
    %121 = tpu.dynamic_rotate %119 by %c1_i32_92 dim 1 : vector<16x128xf32>, i32 -> vector<16x128xf32>
    %122 = arith.select %20, %120, %121 : vector<16x128xi1>, vector<16x128xf32>
    %123 = arith.mulf %119, %105 : vector<16x128xf32>
    %124 = arith.mulf %122, %106 : vector<16x128xf32>
    %125 = arith.addf %123, %124 : vector<16x128xf32>
    %c0_93 = arith.constant 0 : index
    %c3_94 = arith.constant 3 : index
    %c0_95 = arith.constant 0 : index
    %c0_96 = arith.constant 0 : index
    %126 = vector.load %arg8[%c0_93, %c3_94, %c0_95, %c0_96] : memref<1x4x16x128xf32, #tpu.memory_space<vmem>>, vector<1x1x16x128xf32>
    %127 = vector.shape_cast %126 : vector<1x1x16x128xf32> to vector<16x128xf32>
    %128 = vector.shape_cast %125 : vector<16x128xf32> to vector<1x1x16x128xf32>
    tpu.vector_store %arg8[%c0_93, %c3_94, %c0_95, %c0_96], %128 {strides = array<i32>} : memref<1x4x16x128xf32, #tpu.memory_space<vmem>>, vector<1x1x16x128xf32>,
    return
  }
  func.func @transform_0(%arg0: i32, %arg1: i32, %arg2: i32) -> (i32, i32, i32) {
    %c0_i32 = arith.constant 0 : i32
    %c0_i32_0 = arith.constant 0 : i32
    return %arg0, %arg2, %c0_i32 : i32, i32, i32
  }
  func.func @transform_1(%arg0: i32, %arg1: i32, %arg2: i32) -> (i32, i32, i32) {
    %c0_i32 = arith.constant 0 : i32
    %c0_i32_0 = arith.constant 0 : i32
    %c0_i32_1 = arith.constant 0 : i32
    return %arg1, %c0_i32, %c0_i32_0 : i32, i32, i32
  }
  func.func @transform_2(%arg0: i32, %arg1: i32, %arg2: i32) -> (i32, i32, i32, i32) {
    %c0_i32 = arith.constant 0 : i32
    %c0_i32_0 = arith.constant 0 : i32
    return %arg0, %arg1, %arg2, %c0_i32 : i32, i32, i32, i32
  }
  func.func @transform_3(%arg0: i32, %arg1: i32, %arg2: i32) -> (i32, i32, i32, i32) {
    %c0_i32 = arith.constant 0 : i32
    %c0_i32_0 = arith.constant 0 : i32
    return %arg0, %arg1, %arg2, %c0_i32 : i32, i32, i32, i32
  }
  func.func @transform_4(%arg0: i32, %arg1: i32, %arg2: i32) -> (i32, i32, i32, i32) {
    %c0_i32 = arith.constant 0 : i32
    %c0_i32_0 = arith.constant 0 : i32
    return %arg0, %arg1, %arg2, %c0_i32 : i32, i32, i32, i32
  }
  func.func @transform_5(%arg0: i32, %arg1: i32, %arg2: i32) -> (i32, i32, i32, i32) {
    %c0_i32 = arith.constant 0 : i32
    %c0_i32_0 = arith.constant 0 : i32
    return %arg0, %arg1, %arg2, %c0_i32 : i32, i32, i32, i32
  }
}

</mosaic_0001>

<llo_original>
// kernel: rope2d_mixed.1
$region0: #{rope2d_mixed.1}
  #allocation0 [shape = 'u32[]', space=smem, size = 0x4, offset = 0x4, fixed_abs, tag = 'smem constant byte address 0x4 - core index']
  #allocation1 [shape = 'u32[144,128]{1,0:T(1,128)}', space=vmem, size = 0x12000, scoped, tag = 'internal scratch']
  %s0 = inlined_call_operand.vmem [shape: f32[2,16,8], index: 0, kind: input, shape index: {}]
  %s1 = inlined_call_operand.vmem [shape: f32[4,8,128], index: 1, kind: input, shape index: {}]
  %s2 = inlined_call_operand.vmem [shape: f32[2,4,16,128], index: 2, kind: input, shape index: {}, may-alias: {2,4}]
  %s3 = inlined_call_operand.vmem [shape: f32[2,4,16,128], index: 3, kind: input, shape index: {}, may-alias: {3,5}]
  %s4 = inlined_call_operand.vmem [shape: f32[2,4,16,128], index: 4, kind: output, shape index: {0}, may-alias: {2,4}]
  %s5 = inlined_call_operand.vmem [shape: f32[2,4,16,128], index: 5, kind: output, shape index: {1}, may-alias: {3,5}]
  %6 = xla_tuple %s4, %s5
  %s7 = sld [smem:[#allocation0]]
  $region57: #{rope2d_mixed.1} parent=0
    _
  %s9 = ssub.s32 1, %s7
  %s10 = scalar_select 0, %s9, %s7
  loop: start=0, step=1, limit=4
  $region2: #{rope2d_mixed.1} parent=0 // loop_pre_header
    _
  $region3: #{rope2d_mixed.1} parent=0 // loop_header
    %s12 = sphi 0, %s16
    %p13 = scmp.ge.s32.totalorder %s12, 4
    %s19 = sphi 0, %s38
    %s20 = sphi 0, %s34
    %s21 = sphi 0, %s30
    %s22 = sphi 0, %s19
    %s23 = sphi 0, %s20
    %s24 = sphi 0, %s21
    %s25 = sphi 0, %s22
    %s26 = sphi 0, %s23
    %s27 = sphi 0, %s24
    %s43 = sphi 0, %s45
    %s46 = sphi 0, %s43
    %s47 = sphi 0, %s46
    %s63 = sphi 0, %s47
    %s69 = sphi 0, %s71
    %s72 = sphi 0, %s69
    %s73 = sphi 0, %s72
    %s89 = sphi 0, %s73
    %s99 = sphi 0, %s101
    %s102 = sphi 0, %s99
    %s103 = sphi 0, %s102
    %s119 = sphi 0, %s103
    %s129 = sphi 0, %s131
    %s132 = sphi 0, %s129
    %s133 = sphi 0, %s132
    %s149 = sphi 0, %s133
    %s159 = sphi 0, %s161
    %s162 = sphi 0, %s159
    %s163 = sphi 0, %s162
    %s179 = sphi 0, %s163
    %s189 = sphi 0, %s191
    %s192 = sphi 0, %s189
    %s193 = sphi 0, %s192
    %s209 = sphi 0, %s193
  $region4: #{rope2d_mixed.1} parent=0 // loop_header_branch
    %15 = sbr.rel (%p13) target = $region8
  $region5: #{rope2d_mixed.1} parent=0 // loop_body
    %s17 = ssub.s32 %s12, 1
    %s18 = ssub.s32 %s12, 2
    %s28 = sadd.s32 1, %s21
    %p29 = scmp.ge.s32.totalorder %s28, 1
    %s30 = scalar_select %p29, 0, %s28
    %s31 = sadd.s32 1, %s20
    %s32 = scalar_select %p29, %s31, %s20
    %p33 = scmp.ge.s32.totalorder %s32, 1
    %s34 = scalar_select %p33, 0, %s32
    %s35 = sadd.s32 1, %s19
    %s36 = scalar_select %p33, %s35, %s19
    %p37 = scmp.ge.s32.totalorder %s36, 2
    %s38 = scalar_select %p37, 0, %s36
    %s39 = ssub.s32 %s19, %s38
    %s40 = ssub.s32 %s21, %s30
    %s41 = sor.u32 %s39, %s40
    %p42 = scmp.eq.s32.totalorder %s41, 0
    %s44 = sadd.s32 %s43, 1
    %s45 = scalar_select %p42, %s43, %s44
    %p48 = pneg %p42
    %p49 = scmp.eq.s32.totalorder %s12, 1
    %p50 = por %p48, %p49
    %p51 = scmp.ne.s32.totalorder %s43, %s46
    %p52 = scmp.eq.s32.totalorder %s12, 0
    %p53 = por %p51, %p52
    %p54 = scmp.ne.s32.totalorder %s43, %s46
    %p55 = scmp.eq.s32.totalorder %s17, 1
    %p56 = por %p54, %p55
    %p57 = scmp.ne.s32.totalorder %s46, %s47
    %p58 = scmp.eq.s32.totalorder %s17, 0
    %p59 = por %p57, %p58
    %p60 = scmp.ne.s32.totalorder %s46, %s47
    %p61 = scmp.eq.s32.totalorder %s18, 1
    %p62 = por %p60, %p61
    %p64 = scmp.ne.s32.totalorder %s47, %s63
    %p65 = scmp.eq.s32.totalorder %s18, 0
    %p66 = por %p64, %p65
    %s67 = ssub.s32 %s20, %s34
    %p68 = scmp.eq.s32.totalorder %s67, 0
    %s70 = sadd.s32 %s69, 1
    %s71 = scalar_select %p68, %s69, %s70
    %p74 = pneg %p68
    %p75 = scmp.eq.s32.totalorder %s12, 1
    %p76 = por %p74, %p75
    %p77 = scmp.ne.s32.totalorder %s69, %s72
    %p78 = scmp.eq.s32.totalorder %s12, 0
    %p79 = por %p77, %p78
    %p80 = scmp.ne.s32.totalorder %s69, %s72
    %p81 = scmp.eq.s32.totalorder %s17, 1
    %p82 = por %p80, %p81
    %p83 = scmp.ne.s32.totalorder %s72, %s73
    %p84 = scmp.eq.s32.totalorder %s17, 0
    %p85 = por %p83, %p84
    %p86 = scmp.ne.s32.totalorder %s72, %s73
    %p87 = scmp.eq.s32.totalorder %s18, 1
    %p88 = por %p86, %p87
    %p90 = scmp.ne.s32.totalorder %s73, %s89
    %p91 = scmp.eq.s32.totalorder %s18, 0
    %p92 = por %p90, %p91
    %s93 = ssub.s32 %s19, %s38
    %s94 = ssub.s32 %s20, %s34
    %s95 = sor.u32 %s93, %s94
    %s96 = ssub.s32 %s21, %s30
    %s97 = sor.u32 %s95, %s96
    %p98 = scmp.eq.s32.totalorder %s97, 0
    %s100 = sadd.s32 %s99, 1
    %s101 = scalar_select %p98, %s99, %s100
    %p104 = pneg %p98
    %p105 = scmp.eq.s32.totalorder %s12, 1
    %p106 = por %p104, %p105
    %p107 = scmp.ne.s32.totalorder %s99, %s102
    %p108 = scmp.eq.s32.totalorder %s12, 0
    %p109 = por %p107, %p108
    %p110 = scmp.ne.s32.totalorder %s99, %s102
    %p111 = scmp.eq.s32.totalorder %s17, 1
    %p112 = por %p110, %p111
    %p113 = scmp.ne.s32.totalorder %s102, %s103
    %p114 = scmp.eq.s32.totalorder %s17, 0
    %p115 = por %p113, %p114
    %p116 = scmp.ne.s32.totalorder %s102, %s103
    %p117 = scmp.eq.s32.totalorder %s18, 1
    %p118 = por %p116, %p117
    %p120 = scmp.ne.s32.totalorder %s103, %s119
    %p121 = scmp.eq.s32.totalorder %s18, 0
    %p122 = por %p120, %p121
    %s123 = ssub.s32 %s19, %s38
    %s124 = ssub.s32 %s20, %s34
    %s125 = sor.u32 %s123, %s124
    %s126 = ssub.s32 %s21, %s30
    %s127 = sor.u32 %s125, %s126
    %p128 = scmp.eq.s32.totalorder %s127, 0
    %s130 = sadd.s32 %s129, 1
    %s131 = scalar_select %p128, %s129, %s130
    %p134 = pneg %p128
    %p135 = scmp.eq.s32.totalorder %s12, 1
    %p136 = por %p134, %p135
    %p137 = scmp.ne.s32.totalorder %s129, %s132
    %p138 = scmp.eq.s32.totalorder %s12, 0
    %p139 = por %p137, %p138
    %p140 = scmp.ne.s32.totalorder %s129, %s132
    %p141 = scmp.eq.s32.totalorder %s17, 1
    %p142 = por %p140, %p141
    %p143 = scmp.ne.s32.totalorder %s132, %s133
    %p144 = scmp.eq.s32.totalorder %s17, 0
    %p145 = por %p143, %p144
    %p146 = scmp.ne.s32.totalorder %s132, %s133
    %p147 = scmp.eq.s32.totalorder %s18, 1
    %p148 = por %p146, %p147
    %p150 = scmp.ne.s32.totalorder %s133, %s149
    %p151 = scmp.eq.s32.totalorder %s18, 0
    %p152 = por %p150, %p151
    %s153 = ssub.s32 %s19, %s38
    %s154 = ssub.s32 %s20, %s34
    %s155 = sor.u32 %s153, %s154
    %s156 = ssub.s32 %s21, %s30
    %s157 = sor.u32 %s155, %s156
    %p158 = scmp.eq.s32.totalorder %s157, 0
    %s160 = sadd.s32 %s159, 1
    %s161 = scalar_select %p158, %s159, %s160
    %p164 = pneg %p158
    %p165 = scmp.eq.s32.totalorder %s12, 1
    %p166 = por %p164, %p165
    %p167 = scmp.ne.s32.totalorder %s159, %s162
    %p168 = scmp.eq.s32.totalorder %s12, 0
    %p169 = por %p167, %p168
    %p170 = scmp.ne.s32.totalorder %s159, %s162
    %p171 = scmp.eq.s32.totalorder %s17, 1
    %p172 = por %p170, %p171
    %p173 = scmp.ne.s32.totalorder %s162, %s163
    %p174 = scmp.eq.s32.totalorder %s17, 0
    %p175 = por %p173, %p174
    %p176 = scmp.ne.s32.totalorder %s162, %s163
    %p177 = scmp.eq.s32.totalorder %s18, 1
    %p178 = por %p176, %p177
    %p180 = scmp.ne.s32.totalorder %s163, %s179
    %p181 = scmp.eq.s32.totalorder %s18, 0
    %p182 = por %p180, %p181
    %s183 = ssub.s32 %s19, %s38
    %s184 = ssub.s32 %s20, %s34
    %s185 = sor.u32 %s183, %s184
    %s186 = ssub.s32 %s21, %s30
    %s187 = sor.u32 %s185, %s186
    %p188 = scmp.eq.s32.totalorder %s187, 0
    %s190 = sadd.s32 %s189, 1
    %s191 = scalar_select %p188, %s189, %s190
    %p194 = pneg %p188
    %p195 = scmp.eq.s32.totalorder %s12, 1
    %p196 = por %p194, %p195
    %p197 = scmp.ne.s32.totalorder %s189, %s192
    %p198 = scmp.eq.s32.totalorder %s12, 0
    %p199 = por %p197, %p198
    %p200 = scmp.ne.s32.totalorder %s189, %s192
    %p201 = scmp.eq.s32.totalorder %s17, 1
    %p202 = por %p200, %p201
    %p203 = scmp.ne.s32.totalorder %s192, %s193
    %p204 = scmp.eq.s32.totalorder %s17, 0
    %p205 = por %p203, %p204
    %p206 = scmp.ne.s32.totalorder %s192, %s193
    %p207 = scmp.eq.s32.totalorder %s18, 1
    %p208 = por %p206, %p207
    %p210 = scmp.ne.s32.totalorder %s193, %s209
    %p211 = scmp.eq.s32.totalorder %s18, 0
    %p212 = por %p210, %p211
    %p213 = scmp.le.s32.totalorder 1, %s12
    %p214 = scmp.lt.s32.totalorder %s12, 3
    %p215 = pnand %p213, %p214
    %p216 = pneg %p215
    // Predicated region
    $region9: #{rope2d_mixed.1} parent=5 // pred_check
      _
    $region10: #{rope2d_mixed.1} parent=5 // pred_check_branch
      %218 = sbr.rel (%p215) target = $region12
    $region11: #{rope2d_mixed.1} parent=5 // pred_region
      %s219 = ssub.s32 %s12, 1
      // Predicated region
      $region13: #{rope2d_mixed.1} parent=11 // pred_check
        %p220 = pneg %p85
      $region14: #{rope2d_mixed.1} parent=11 // pred_check_branch
        %222 = sbr.rel (%p220) target = $region16
      $region15: #{rope2d_mixed.1} parent=11 // pred_region
        %s223 = smul.u32 4, %s23
        %p224 = scmp.lt.s32.totalorder %s223, 3
        %s225 = scalar_select %p224, %s223, 3
        %s226 = smul.addr %s225, 8
        %s227 = scalar_lea.vmem %s1, %s226
        %s228 = smul.u32 4, %s23
      $region16: #{rope2d_mixed.1} parent=11 // pred_fallthru
        _
    $region12: #{rope2d_mixed.1} parent=5 // pred_fallthru
      _
    %p229 = scmp.lt.s32.totalorder %s12, 2
    // Predicated region
    $region17: #{rope2d_mixed.1} parent=5 // pred_check
      %p230 = pneg %p229
    $region18: #{rope2d_mixed.1} parent=5 // pred_check_branch
      %232 = sbr.rel (%p230) target = $region20
    $region19: #{rope2d_mixed.1} parent=5 // pred_region
      // Predicated region
      $region21: #{rope2d_mixed.1} parent=19 // pred_check
        %p233 = pneg %p53
      $region22: #{rope2d_mixed.1} parent=19 // pred_check_branch
        %235 = sbr.rel (%p233) target = $region24
      $region23: #{rope2d_mixed.1} parent=19 // pred_region
        %s236 = smul.u32 2, %s21
        %p237 = scmp.lt.s32.totalorder %s19, 1
        %s238 = scalar_select %p237, %s19, 1
        %p239 = scmp.lt.s32.totalorder %s236, 1
        %s240 = scalar_select %p239, %s236, 1
        %s241 = smul.addr %s238, 2
        %s242 = sadd.s32 %s240, %s241
        %s243 = smul.addr %s242, 8
        %s244 = scalar_lea.vmem %s0, %s243
        %s245 = smul.u32 2, %s21
      $region24: #{rope2d_mixed.1} parent=19 // pred_fallthru
        _
      // Predicated region
      $region25: #{rope2d_mixed.1} parent=19 // pred_check
        %p246 = pneg %p109
      $region26: #{rope2d_mixed.1} parent=19 // pred_check_branch
        %248 = sbr.rel (%p246) target = $region28
      $region27: #{rope2d_mixed.1} parent=19 // pred_region
        %s249 = smul.u32 4, %s20
        %s250 = smul.u32 2, %s21
        %p251 = scmp.lt.s32.totalorder %s19, 1
        %s252 = scalar_select %p251, %s19, 1
        %p253 = scmp.lt.s32.totalorder %s249, 3
        %s254 = scalar_select %p253, %s249, 3
        %p255 = scmp.lt.s32.totalorder %s250, 1
        %s256 = scalar_select %p255, %s250, 1
        %s257 = smul.addr %s254, 2
        %s258 = sadd.s32 %s256, %s257
        %s259 = smul.addr %s252, 8
        %s260 = sadd.s32 %s258, %s259
        %s261 = smul.addr %s260, 8
        %s262 = scalar_lea.vmem %s2, %s261
        %s263 = smul.u32 4, %s20
        %s264 = smul.u32 2, %s21
      $region28: #{rope2d_mixed.1} parent=19 // pred_fallthru
        _
      // Predicated region
      $region29: #{rope2d_mixed.1} parent=19 // pred_check
        %p265 = pneg %p139
      $region30: #{rope2d_mixed.1} parent=19 // pred_check_branch
        %267 = sbr.rel (%p265) target = $region32
      $region31: #{rope2d_mixed.1} parent=19 // pred_region
        %s268 = smul.u32 4, %s20
        %s269 = smul.u32 2, %s21
        %p270 = scmp.lt.s32.totalorder %s19, 1
        %s271 = scalar_select %p270, %s19, 1
        %p272 = scmp.lt.s32.totalorder %s268, 3
        %s273 = scalar_select %p272, %s268, 3
        %p274 = scmp.lt.s32.totalorder %s269, 1
        %s275 = scalar_select %p274, %s269, 1
        %s276 = smul.addr %s273, 2
        %s277 = sadd.s32 %s275, %s276
        %s278 = smul.addr %s271, 8
        %s279 = sadd.s32 %s277, %s278
        %s280 = smul.addr %s279, 8
        %s281 = scalar_lea.vmem %s3, %s280
        %s282 = smul.u32 4, %s20
        %s283 = smul.u32 2, %s21
      $region32: #{rope2d_mixed.1} parent=19 // pred_fallthru
        _
    $region20: #{rope2d_mixed.1} parent=5 // pred_fallthru
      _
    %p284 = scmp.le.s32.totalorder 1, %s12
    %p285 = scmp.lt.s32.totalorder %s12, 3
    %p286 = pnand %p284, %p285
    %p287 = pneg %p286
    // Predicated region
    $region33: #{rope2d_mixed.1} parent=5 // pred_check
      _
    $region34: #{rope2d_mixed.1} parent=5 // pred_check_branch
      %289 = sbr.rel (%p286) target = $region36
    $region35: #{rope2d_mixed.1} parent=5 // pred_region
      %s290 = ssub.s32 %s12, 1
      %s291 = smul.u32 2, %s24
      %p292 = scmp.lt.s32.totalorder %s22, 1
      %s293 = scalar_select %p292, %s22, 1
      %p294 = scmp.lt.s32.totalorder %s291, 1
      %s295 = scalar_select %p294, %s291, 1
      %s296 = smul.addr %s293, 2
      %s297 = sadd.s32 %s295, %s296
      %s298 = smul.addr %s297, 8
      %s299 = scalar_lea.vmem %s0, %s298
      %p300 = pneg %p59
      %p301 = pneg %p56
      %s302 = smul.u32 4, %s23
      %p303 = scmp.lt.s32.totalorder %s302, 3
      %s304 = scalar_select %p303, %s302, 3
      %s305 = smul.addr %s304, 8
      %s306 = scalar_lea.vmem %s1, %s305
      %p307 = pneg %p85
      %p308 = pneg %p82
      %s309 = smul.u32 4, %s23
      %s310 = smul.u32 2, %s24
      %p311 = scmp.lt.s32.totalorder %s22, 1
      %s312 = scalar_select %p311, %s22, 1
      %p313 = scmp.lt.s32.totalorder %s309, 3
      %s314 = scalar_select %p313, %s309, 3
      %p315 = scmp.lt.s32.totalorder %s310, 1
      %s316 = scalar_select %p315, %s310, 1
      %s317 = smul.addr %s314, 2
      %s318 = sadd.s32 %s316, %s317
      %s319 = smul.addr %s312, 8
      %s320 = sadd.s32 %s318, %s319
      %s321 = smul.addr %s320, 8
      %s322 = scalar_lea.vmem %s2, %s321
      %p323 = pneg %p115
      %p324 = pneg %p112
      %s325 = smul.u32 4, %s23
      %s326 = smul.u32 2, %s24
      %p327 = scmp.lt.s32.totalorder %s22, 1
      %s328 = scalar_select %p327, %s22, 1
      %p329 = scmp.lt.s32.totalorder %s325, 3
      %s330 = scalar_select %p329, %s325, 3
      %p331 = scmp.lt.s32.totalorder %s326, 1
      %s332 = scalar_select %p331, %s326, 1
      %s333 = smul.addr %s330, 2
      %s334 = sadd.s32 %s332, %s333
      %s335 = smul.addr %s328, 8
      %s336 = sadd.s32 %s334, %s335
      %s337 = smul.addr %s336, 8
      %s338 = scalar_lea.vmem %s3, %s337
      %p339 = pneg %p145
      %p340 = pneg %p142
      %p341 = pneg %p175
      %p342 = pneg %p172
      %s343 = smul.u32 4, %s23
      %s344 = smul.u32 2, %s24
      %p345 = scmp.lt.s32.totalorder %s22, 1
      %s346 = scalar_select %p345, %s22, 1
      %p347 = scmp.lt.s32.totalorder %s343, 3
      %s348 = scalar_select %p347, %s343, 3
      %p349 = scmp.lt.s32.totalorder %s344, 1
      %s350 = scalar_select %p349, %s344, 1
      %s351 = smul.addr %s348, 2
      %s352 = sadd.s32 %s350, %s351
      %s353 = smul.addr %s346, 8
      %s354 = sadd.s32 %s352, %s353
      %s355 = smul.addr %s354, 8
      %s356 = scalar_lea.vmem %s4, %s355
      %p357 = pneg %p205
      %p358 = pneg %p202
      %s359 = smul.u32 4, %s23
      %s360 = smul.u32 2, %s24
      %p361 = scmp.lt.s32.totalorder %s22, 1
      %s362 = scalar_select %p361, %s22, 1
      %p363 = scmp.lt.s32.totalorder %s359, 3
      %s364 = scalar_select %p363, %s359, 3
      %p365 = scmp.lt.s32.totalorder %s360, 1
      %s366 = scalar_select %p365, %s360, 1
      %s367 = smul.addr %s364, 2
      %s368 = sadd.s32 %s366, %s367
      %s369 = smul.addr %s362, 8
      %s370 = sadd.s32 %s368, %s369
      %s371 = smul.addr %s370, 8
      %s372 = scalar_lea.vmem %s5, %s371
      %s373 = smul.u32 2, %s24
      %p374 = scmp.lt.s32.totalorder %s22, 1
      %s375 = scalar_select %p374, %s22, 1
      %p376 = scmp.lt.s32.totalorder %s373, 1
      %s377 = scalar_select %p376, %s373, 1
      %s378 = smul.addr %s375, 2
      %s379 = sadd.s32 %s377, %s378
      %s380 = smul.addr %s379, 8
      %s381 = scalar_lea.vmem %s0, %s380
      %s382 = smul.u32 2, %s24
      %s383 = smul.u32 4, %s23
      %p384 = scmp.lt.s32.totalorder %s383, 3
      %s385 = scalar_select %p384, %s383, 3
      %s386 = smul.addr %s385, 8
      %s387 = scalar_lea.vmem %s1, %s386
      %s388 = smul.u32 4, %s23
      %s389 = smul.u32 4, %s23
      %s390 = smul.u32 2, %s24
      %p391 = scmp.lt.s32.totalorder %s22, 1
      %s392 = scalar_select %p391, %s22, 1
      %p393 = scmp.lt.s32.totalorder %s389, 3
      %s394 = scalar_select %p393, %s389, 3
      %p395 = scmp.lt.s32.totalorder %s390, 1
      %s396 = scalar_select %p395, %s390, 1
      %s397 = smul.addr %s394, 2
      %s398 = sadd.s32 %s396, %s397
      %s399 = smul.addr %s392, 8
      %s400 = sadd.s32 %s398, %s399
      %s401 = smul.addr %s400, 8
      %s402 = scalar_lea.vmem %s2, %s401
      %s403 = smul.u32 4, %s23
      %s404 = smul.u32 2, %s24
      %s405 = smul.u32 4, %s23
      %s406 = smul.u32 2, %s24
      %p407 = scmp.lt.s32.totalorder %s22, 1
      %s408 = scalar_select %p407, %s22, 1
      %p409 = scmp.lt.s32.totalorder %s405, 3
      %s410 = scalar_select %p409, %s405, 3
      %p411 = scmp.lt.s32.totalorder %s406, 1
      %s412 = scalar_select %p411, %s406, 1
      %s413 = smul.addr %s410, 2
      %s414 = sadd.s32 %s412, %s413
      %s415 = smul.addr %s408, 8
      %s416 = sadd.s32 %s414, %s415
      %s417 = smul.addr %s416, 8
      %s418 = scalar_lea.vmem %s3, %s417
      %s419 = smul.u32 4, %s23
      %s420 = smul.u32 2, %s24
      %s421 = smul.u32 4, %s23
      %s422 = smul.u32 2, %s24
      %p423 = scmp.lt.s32.totalorder %s22, 1
      %s424 = scalar_select %p423, %s22, 1
      %p425 = scmp.lt.s32.totalorder %s421, 3
      %s426 = scalar_select %p425, %s421, 3
      %p427 = scmp.lt.s32.totalorder %s422, 1
      %s428 = scalar_select %p427, %s422, 1
      %s429 = smul.addr %s426, 2
      %s430 = sadd.s32 %s428, %s429
      %s431 = smul.addr %s424, 8
      %s432 = sadd.s32 %s430, %s431
      %s433 = smul.addr %s432, 8
      %s434 = scalar_lea.vmem %s4, %s433
      %s435 = smul.u32 4, %s23
      %s436 = smul.u32 2, %s24
      %s437 = smul.u32 4, %s23
      %s438 = smul.u32 2, %s24
      %p439 = scmp.lt.s32.totalorder %s22, 1
      %s440 = scalar_select %p439, %s22, 1
      %p441 = scmp.lt.s32.totalorder %s437, 3
      %s442 = scalar_select %p441, %s437, 3
      %p443 = scmp.lt.s32.totalorder %s438, 1
      %s444 = scalar_select %p443, %s438, 1
      %s445 = smul.addr %s442, 2
      %s446 = sadd.s32 %s444, %s445
      %s447 = smul.addr %s440, 8
      %s448 = sadd.s32 %s446, %s447
      %s449 = smul.addr %s448, 8
      %s450 = scalar_lea.vmem %s5, %s449
      %s451 = smul.u32 4, %s23
      %s452 = smul.u32 2, %s24
      %v453 = vld [vmem:[%s381] sm:$0xff]
      %v454 = vld [vmem:[%s381 + $0x8] sm:$0xff]
      %v455 = vlaneseq
      %v456 = vand.u32 %v455, 127
      %vm457 = vcmp.lt.s32.totalorder %v456, 0
      %v458 = vsub.s32 0, %v456
      %v459 = vsel %vm457, %v458, %v456
      %v460 = vshrl.u32 %v459, 1
      %v461 = vand.u32 %v459, 1
      %v462 = vsub.s32 0, %v461
      %v463 = vsel %vm457, %v462, %v461
      %vm464 = vcmp.ne.s32.totalorder %v463, 0
      %vm465 = vcmp.lt.s32.totalorder %v463, 0
      %vm466 = vmand %vm465, %vm464
      %v467 = vadd.s32 %v463, 2
      %v468 = vsel %vm466, %v467, %v463
      %vm469 = vcmp.eq.s32.totalorder %v468, 0
      %v470 = vld [vmem:[%s387] sm:$0xff]
      %vm471 = vcmask 64512
      %v473 = vsel %vm471, %v453, 0
      %v476 = vsel %vm471, %v454, 0
      %478 = vmatprep.subr.mxu0 0.0
      %479 = vmatpush1.msra.mxu0 0.0
      %480 = vmatprep.subr.mxu0 0.0
      %481 = vmatpush1.msra.mxu0 0.0
      %482 = vmatprep.subr.mxu0 0.0
      %483 = vmatpush1.msra.mxu0 0.0
      %484 = vmatprep.subr.mxu0 0.0
      %485 = vmatpush1.msra.mxu0 0.0
      %486 = vmatprep.subr.mxu0 0.0
      %487 = vmatpush1.msra.mxu0 0.0
      %488 = vmatprep.subr.mxu0 0.0
      %489 = vmatpush1.msra.mxu0 0.0
      %490 = vmatprep.subr.mxu0 0.0
      %491 = vmatpush1.msra.mxu0 0.0
      %492 = vmatprep.subr.mxu0 0.0
      %493 = vmatpush1.msra.mxu0 0.0
      %494 = vmatprep.subr.mxu0 0.0
      %495 = vmatpush1.msra.mxu0 0.0
      %496 = vmatprep.subr.mxu0 0.0
      %497 = vmatpush1.msra.mxu0 0.0
      %498 = vmatprep.subr.mxu0 0.0
      %499 = vmatpush1.msra.mxu0 0.0
      %500 = vmatprep.subr.mxu0 0.0
      %501 = vmatpush1.msra.mxu0 0.0
      %502 = vmatprep.subr.mxu0 0.0
      %503 = vmatpush1.msra.mxu0 0.0
      %504 = vmatprep.subr.mxu0 0.0
      %505 = vmatpush1.msra.mxu0 0.0
      %506 = vmatprep.subr.mxu0 0.0
      %507 = vmatpush1.msra.mxu0 0.0
      %508 = vmatprep.subr.mxu0 0.0
      %509 = vmatpush1.msra.mxu0 %v470
      %510 = vmatprep.subr.mxu0 0.0
      %511 = vmatpush2.msra.mxu0 0.0
      %512 = vmatprep.subr.mxu0 0.0
      %513 = vmatpush2.msra.mxu0 0.0
      %514 = vmatprep.subr.mxu0 0.0
      %515 = vmatpush2.msra.mxu0 0.0
      %516 = vmatprep.subr.mxu0 0.0
      %517 = vmatpush2.msra.mxu0 0.0
      %518 = vmatprep.subr.mxu0 0.0
      %519 = vmatpush2.msra.mxu0 0.0
      %520 = vmatprep.subr.mxu0 0.0
      %521 = vmatpush2.msra.mxu0 0.0
      %522 = vmatprep.subr.mxu0 0.0
      %523 = vmatpush2.msra.mxu0 0.0
      %524 = vmatprep.subr.mxu0 0.0
      %525 = vmatpush2.msra.mxu0 0.0
      %526 = vmatprep.subr.mxu0 0.0
      %527 = vmatpush2.msra.mxu0 0.0
      %528 = vmatprep.subr.mxu0 0.0
      %529 = vmatpush2.msra.mxu0 0.0
      %530 = vmatprep.subr.mxu0 0.0
      %531 = vmatpush2.msra.mxu0 0.0
      %532 = vmatprep.subr.mxu0 0.0
      %533 = vmatpush2.msra.mxu0 0.0
      %534 = vmatprep.subr.mxu0 0.0
      %535 = vmatpush2.msra.mxu0 0.0
      %536 = vmatprep.subr.mxu0 0.0
      %537 = vmatpush2.msra.mxu0 0.0
      %538 = vmatprep.subr.mxu0 0.0
      %539 = vmatpush2.msra.mxu0 0.0
      %540 = vmatprep.subr.mxu0 0.0
      %541 = vmatpush2.msra.mxu0 0.0
      %542 = vmatprep.mubr.f32.mxu0 0.0
      %543 = vmatmul.mubr.f32.gmra.mxu0 %v473
      %v544 = vpop.f32.mrf.mxu0
      %v545 = vadd.f32 0.0, %v544
      %v546 = vpop.f32.mrf.mxu0
      %547 = vmatprep.mubr.f32.mxu0 0.0
      %548 = vmatmul.mubr.f32.gmra.mxu0 %v476
      %v549 = vpop.f32.mrf.mxu0
      %v550 = vadd.f32 0.0, %v549
      %v551 = vpop.f32.mrf.mxu0
      %552 = vdwg.mxu0
      %v553 = vand.u32 2147483647, %v545
      %vm554 = vcmp.le.f32.partialorder %v553, 0.7853982
      %vm555 = vcmp.lt.s32.totalorder %v545, 0
      %v556 = vand.u32 %v545, 2139095040
      %v557 = vshrl.u32 %v556, 23
      %v558 = vsub.s32 %v557, 127
      %v559 = vand.u32 2147483647, %v545
      %v560 = vand.u32 %v559, 8388607
      %v561 = vor.u32 %v560, 8388608
      %v562 = vsub.s32 0, %v561
      %v563 = vadd.s32 %v558, 1
      %vm564 = vcmp.gt.s32.totalorder %v563, 0
      %v565 = vsel %vm564, %v563, 0
      %v566 = vshrl.u32 %v565, 5
      %v567 = vand.u32 %v565, 31
      %v568 = vsub.s32 32, %v567
      %v569 = vshrl.u32 683565275, %v568
      %v570 = vshll.u32 683565275, %v567
      %v571 = vshrl.u32 2475754826, %v568
      %v572 = vor.u32 %v570, %v571
      %v573 = vshll.u32 2475754826, %v567
      %v574 = vshrl.u32 2131351028, %v568
      %v575 = vor.u32 %v573, %v574
      %v576 = vshll.u32 2131351028, %v567
      %v577 = vshrl.u32 2102212464, %v568
      %v578 = vor.u32 %v576, %v577
      %v579 = vshll.u32 2102212464, %v567
      %v580 = vshrl.u32 920167782, %v568
      %v581 = vor.u32 %v579, %v580
      %v582 = vshll.u32 920167782, %v567
      %v583 = vshrl.u32 1326507024, %v568
      %v584 = vor.u32 %v582, %v583
      %vm585 = vcmp.lt.s32.totalorder %v566, 1
      %vm586 = vcmp.lt.s32.totalorder %v566, 2
      %vm587 = vcmp.lt.s32.totalorder %v566, 3
      %vm588 = vcmp.lt.s32.totalorder %v566, 4
      %v589 = vsel %vm585, %v569, %v572
      %v590 = vsel %vm588, %v578, 2102212464
      %v591 = vsel %vm587, %v575, %v590
      %v592 = vsel %vm586, %v589, %v591
      %v593 = vsel %vm585, %v572, %v575
      %v594 = vsel %vm588, %v581, 920167782
      %v595 = vsel %vm587, %v578, %v594
      %v596 = vsel %vm586, %v593, %v595
      %v597 = vsel %vm585, %v575, %v578
      %v598 = vsel %vm588, %v584, 1326507024
      %v599 = vsel %vm587, %v581, %v598
      %v600 = vsel %vm586, %v597, %v599
      %v601 = vshll.u32 %v561, 8
      %v602 = vmul.u32.u64.compose %v601, %v600
      %v603 = vextract.low.u32 %v602
      %v604 = vextract.high.u32 %v602
      %v605 = vmul.u32.u64.compose %v601, %v596
      %v606 = vextract.low.u32 %v605
      %v607 = vextract.high.u32 %v605
      %v608 = vmul.u32 %v601, %v592
      %v609 = vadd.s32 %v604, %v606
      %vm610 = vc.u32 %v604, %v606
      %v611 = vadd.s32 %v607, 1
      %v612 = vsel %vm610, %v611, %v607
      %v613 = vadd.s32 %v608, %v612
      %v614 = vadd.s32 %v613, 536870912
      %v615 = vshrl.u32 %v614, 30
      %v616 = vshll.u32 %v615, 30
      %v617 = vsub.s32 %v613, %v616
      %vm618 = vcmp.lt.s32.totalorder %v617, 0
      %v619 = vsub.s32 0, %v617
      %v620 = vsel %vm618, %v619, %v617
      %v621 = vclz %v620
      %v622 = vsub.s32 %v621, 2
      %vm623 = vcmp.gt.s32.totalorder 0, %v622
      %v624 = vsel %vm623, 0, %v622
      %v625 = vsub.s32 32, %v624
      %v626 = vshll.u32 %v617, %v624
      %v627 = vshrl.u32 %v609, %v625
      %v628 = vor.u32 %v626, %v627
      %v629 = vsub.s32 4294967266, %v624
      %v630 = vadd.s32 %v629, 127
      %v631 = vshll.u32 %v630, 23
      %v632 = vor.u32 4788187, %v631
      %v633 = vand.u32 2147483647, %v632
      %v635 = vcvt.s32.f32 %v628
      %v636 = vmul.f32 %v635, %v633
      %v637 = vxor.u32 %v636, 2147483648
      %v638 = vsel %vm555, %v637, %v636
      %v639 = vsub.s32 4, %v615
      %v640 = vsel %vm555, %v639, %v615
      %v641 = vsel %vm554, %v545, %v638
      %v642 = vsel %vm554, 0, %v640
      %v643 = vcosq.f32.pop %v641
      %v644 = vsinq.f32.pop %v641
      %vm645 = vweird.f32 %v545
      %v646 = vand.u32 %v642, 3
      %vm647 = vcmp.lt.s32.totalorder %v646, 2
      %vm648 = vcmp.eq.s32.totalorder %v646, 0
      %v649 = vxor.u32 %v644, 2147483648
      %v650 = vsel %vm648, %v643, %v649
      %vm651 = vcmp.eq.s32.totalorder %v646, 2
      %v652 = vxor.u32 %v643, 2147483648
      %v653 = vsel %vm651, %v652, %v644
      %v654 = vsel %vm647, %v650, %v653
      %v655 = vsel %vm645, nan, %v654
      %v656 = vand.u32 2147483647, %v550
      %vm657 = vcmp.le.f32.partialorder %v656, 0.7853982
      %vm658 = vcmp.lt.s32.totalorder %v550, 0
      %v659 = vand.u32 %v550, 2139095040
      %v660 = vshrl.u32 %v659, 23
      %v661 = vsub.s32 %v660, 127
      %v662 = vand.u32 2147483647, %v550
      %v663 = vand.u32 %v662, 8388607
      %v664 = vor.u32 %v663, 8388608
      %v665 = vsub.s32 0, %v664
      %v666 = vadd.s32 %v661, 1
      %vm667 = vcmp.gt.s32.totalorder %v666, 0
      %v668 = vsel %vm667, %v666, 0
      %v669 = vshrl.u32 %v668, 5
      %v670 = vand.u32 %v668, 31
      %v671 = vsub.s32 32, %v670
      %v672 = vshrl.u32 683565275, %v671
      %v673 = vshll.u32 683565275, %v670
      %v674 = vshrl.u32 2475754826, %v671
      %v675 = vor.u32 %v673, %v674
      %v676 = vshll.u32 2475754826, %v670
      %v677 = vshrl.u32 2131351028, %v671
      %v678 = vor.u32 %v676, %v677
      %v679 = vshll.u32 2131351028, %v670
      %v680 = vshrl.u32 2102212464, %v671
      %v681 = vor.u32 %v679, %v680
      %v682 = vshll.u32 2102212464, %v670
      %v683 = vshrl.u32 920167782, %v671
      %v684 = vor.u32 %v682, %v683
      %v685 = vshll.u32 920167782, %v670
      %v686 = vshrl.u32 1326507024, %v671
      %v687 = vor.u32 %v685, %v686
      %vm688 = vcmp.lt.s32.totalorder %v669, 1
      %vm689 = vcmp.lt.s32.totalorder %v669, 2
      %vm690 = vcmp.lt.s32.totalorder %v669, 3
      %vm691 = vcmp.lt.s32.totalorder %v669, 4
      %v692 = vsel %vm688, %v672, %v675
      %v693 = vsel %vm691, %v681, 2102212464
      %v694 = vsel %vm690, %v678, %v693
      %v695 = vsel %vm689, %v692, %v694
      %v696 = vsel %vm688, %v675, %v678
      %v697 = vsel %vm691, %v684, 920167782
      %v698 = vsel %vm690, %v681, %v697
      %v699 = vsel %vm689, %v696, %v698
      %v700 = vsel %vm688, %v678, %v681
      %v701 = vsel %vm691, %v687, 1326507024
      %v702 = vsel %vm690, %v684, %v701
      %v703 = vsel %vm689, %v700, %v702
      %v704 = vshll.u32 %v664, 8
      %v705 = vmul.u32.u64.compose %v704, %v703
      %v706 = vextract.low.u32 %v705
      %v707 = vextract.high.u32 %v705
      %v708 = vmul.u32.u64.compose %v704, %v699
      %v709 = vextract.low.u32 %v708
      %v710 = vextract.high.u32 %v708
      %v711 = vmul.u32 %v704, %v695
      %v712 = vadd.s32 %v707, %v709
      %vm713 = vc.u32 %v707, %v709
      %v714 = vadd.s32 %v710, 1
      %v715 = vsel %vm713, %v714, %v710
      %v716 = vadd.s32 %v711, %v715
      %v717 = vadd.s32 %v716, 536870912
      %v718 = vshrl.u32 %v717, 30
      %v719 = vshll.u32 %v718, 30
      %v720 = vsub.s32 %v716, %v719
      %vm721 = vcmp.lt.s32.totalorder %v720, 0
      %v722 = vsub.s32 0, %v720
      %v723 = vsel %vm721, %v722, %v720
      %v724 = vclz %v723
      %v725 = vsub.s32 %v724, 2
      %vm726 = vcmp.gt.s32.totalorder 0, %v725
      %v727 = vsel %vm726, 0, %v725
      %v728 = vsub.s32 32, %v727
      %v729 = vshll.u32 %v720, %v727
      %v730 = vshrl.u32 %v712, %v728
      %v731 = vor.u32 %v729, %v730
      %v732 = vsub.s32 4294967266, %v727
      %v733 = vadd.s32 %v732, 127
      %v734 = vshll.u32 %v733, 23
      %v735 = vor.u32 4788187, %v734
      %v736 = vand.u32 2147483647, %v735
      %v738 = vcvt.s32.f32 %v731
      %v739 = vmul.f32 %v738, %v736
      %v740 = vxor.u32 %v739, 2147483648
      %v741 = vsel %vm658, %v740, %v739
      %v742 = vsub.s32 4, %v718
      %v743 = vsel %vm658, %v742, %v718
      %v744 = vsel %vm657, %v550, %v741
      %v745 = vsel %vm657, 0, %v743
      %v746 = vcosq.f32.pop %v744
      %v747 = vsinq.f32.pop %v744
      %vm748 = vweird.f32 %v550
      %v749 = vand.u32 %v745, 3
      %vm750 = vcmp.lt.s32.totalorder %v749, 2
      %vm751 = vcmp.eq.s32.totalorder %v749, 0
      %v752 = vxor.u32 %v747, 2147483648
      %v753 = vsel %vm751, %v746, %v752
      %vm754 = vcmp.eq.s32.totalorder %v749, 2
      %v755 = vxor.u32 %v746, 2147483648
      %v756 = vsel %vm754, %v755, %v747
      %v757 = vsel %vm750, %v753, %v756
      %v758 = vsel %vm748, nan, %v757
      %v759 = vand.u32 2147483647, %v545
      %vm760 = vcmp.le.f32.partialorder %v759, 0.7853982
      %vm761 = vcmp.lt.s32.totalorder %v545, 0
      %v762 = vand.u32 %v545, 2139095040
      %v763 = vshrl.u32 %v762, 23
      %v764 = vsub.s32 %v763, 127
      %v765 = vand.u32 2147483647, %v545
      %v766 = vand.u32 %v765, 8388607
      %v767 = vor.u32 %v766, 8388608
      %v768 = vsub.s32 0, %v767
      %v769 = vadd.s32 %v764, 1
      %vm770 = vcmp.gt.s32.totalorder %v769, 0
      %v771 = vsel %vm770, %v769, 0
      %v772 = vshrl.u32 %v771, 5
      %v773 = vand.u32 %v771, 31
      %v774 = vsub.s32 32, %v773
      %v775 = vshrl.u32 683565275, %v774
      %v776 = vshll.u32 683565275, %v773
      %v777 = vshrl.u32 2475754826, %v774
      %v778 = vor.u32 %v776, %v777
      %v779 = vshll.u32 2475754826, %v773
      %v780 = vshrl.u32 2131351028, %v774
      %v781 = vor.u32 %v779, %v780
      %v782 = vshll.u32 2131351028, %v773
      %v783 = vshrl.u32 2102212464, %v774
      %v784 = vor.u32 %v782, %v783
      %v785 = vshll.u32 2102212464, %v773
      %v786 = vshrl.u32 920167782, %v774
      %v787 = vor.u32 %v785, %v786
      %v788 = vshll.u32 920167782, %v773
      %v789 = vshrl.u32 1326507024, %v774
      %v790 = vor.u32 %v788, %v789
      %vm791 = vcmp.lt.s32.totalorder %v772, 1
      %vm792 = vcmp.lt.s32.totalorder %v772, 2
      %vm793 = vcmp.lt.s32.totalorder %v772, 3
      %vm794 = vcmp.lt.s32.totalorder %v772, 4
      %v795 = vsel %vm791, %v775, %v778
      %v796 = vsel %vm794, %v784, 2102212464
      %v797 = vsel %vm793, %v781, %v796
      %v798 = vsel %vm792, %v795, %v797
      %v799 = vsel %vm791, %v778, %v781
      %v800 = vsel %vm794, %v787, 920167782
      %v801 = vsel %vm793, %v784, %v800
      %v802 = vsel %vm792, %v799, %v801
      %v803 = vsel %vm791, %v781, %v784
      %v804 = vsel %vm794, %v790, 1326507024
      %v805 = vsel %vm793, %v787, %v804
      %v806 = vsel %vm792, %v803, %v805
      %v807 = vshll.u32 %v767, 8
      %v808 = vmul.u32.u64.compose %v807, %v806
      %v809 = vextract.low.u32 %v808
      %v810 = vextract.high.u32 %v808
      %v811 = vmul.u32.u64.compose %v807, %v802
      %v812 = vextract.low.u32 %v811
      %v813 = vextract.high.u32 %v811
      %v814 = vmul.u32 %v807, %v798
      %v815 = vadd.s32 %v810, %v812
      %vm816 = vc.u32 %v810, %v812
      %v817 = vadd.s32 %v813, 1
      %v818 = vsel %vm816, %v817, %v813
      %v819 = vadd.s32 %v814, %v818
      %v820 = vadd.s32 %v819, 536870912
      %v821 = vshrl.u32 %v820, 30
      %v822 = vshll.u32 %v821, 30
      %v823 = vsub.s32 %v819, %v822
      %vm824 = vcmp.lt.s32.totalorder %v823, 0
      %v825 = vsub.s32 0, %v823
      %v826 = vsel %vm824, %v825, %v823
      %v827 = vclz %v826
      %v828 = vsub.s32 %v827, 2
      %vm829 = vcmp.gt.s32.totalorder 0, %v828
      %v830 = vsel %vm829, 0, %v828
      %v831 = vsub.s32 32, %v830
      %v832 = vshll.u32 %v823, %v830
      %v833 = vshrl.u32 %v815, %v831
      %v834 = vor.u32 %v832, %v833
      %v835 = vsub.s32 4294967266, %v830
      %v836 = vadd.s32 %v835, 127
      %v837 = vshll.u32 %v836, 23
      %v838 = vor.u32 4788187, %v837
      %v839 = vand.u32 2147483647, %v838
      %v841 = vcvt.s32.f32 %v834
      %v842 = vmul.f32 %v841, %v839
      %v843 = vxor.u32 %v842, 2147483648
      %v844 = vsel %vm761, %v843, %v842
      %v845 = vsub.s32 4, %v821
      %v846 = vsel %vm761, %v845, %v821
      %v847 = vsel %vm760, %v545, %v844
      %v848 = vsel %vm760, 0, %v846
      %v849 = vcosq.f32.pop %v847
      %v850 = vsinq.f32.pop %v847
      %vm851 = vweird.f32 %v545
      %v852 = vadd.s32 %v848, 3
      %v853 = vand.u32 %v852, 3
      %vm854 = vcmp.lt.s32.totalorder %v853, 2
      %vm855 = vcmp.eq.s32.totalorder %v853, 0
      %v856 = vxor.u32 %v850, 2147483648
      %v857 = vsel %vm855, %v849, %v856
      %vm858 = vcmp.eq.s32.totalorder %v853, 2
      %v859 = vxor.u32 %v849, 2147483648
      %v860 = vsel %vm858, %v859, %v850
      %v861 = vsel %vm854, %v857, %v860
      %v862 = vsel %vm851, nan, %v861
      %v863 = vand.u32 2147483647, %v550
      %vm864 = vcmp.le.f32.partialorder %v863, 0.7853982
      %vm865 = vcmp.lt.s32.totalorder %v550, 0
      %v866 = vand.u32 %v550, 2139095040
      %v867 = vshrl.u32 %v866, 23
      %v868 = vsub.s32 %v867, 127
      %v869 = vand.u32 2147483647, %v550
      %v870 = vand.u32 %v869, 8388607
      %v871 = vor.u32 %v870, 8388608
      %v872 = vsub.s32 0, %v871
      %v873 = vadd.s32 %v868, 1
      %vm874 = vcmp.gt.s32.totalorder %v873, 0
      %v875 = vsel %vm874, %v873, 0
      %v876 = vshrl.u32 %v875, 5
      %v877 = vand.u32 %v875, 31
      %v878 = vsub.s32 32, %v877
      %v879 = vshrl.u32 683565275, %v878
      %v880 = vshll.u32 683565275, %v877
      %v881 = vshrl.u32 2475754826, %v878
      %v882 = vor.u32 %v880, %v881
      %v883 = vshll.u32 2475754826, %v877
      %v884 = vshrl.u32 2131351028, %v878
      %v885 = vor.u32 %v883, %v884
      %v886 = vshll.u32 2131351028, %v877
      %v887 = vshrl.u32 2102212464, %v878
      %v888 = vor.u32 %v886, %v887
      %v889 = vshll.u32 2102212464, %v877
      %v890 = vshrl.u32 920167782, %v878
      %v891 = vor.u32 %v889, %v890
      %v892 = vshll.u32 920167782, %v877
      %v893 = vshrl.u32 1326507024, %v878
      %v894 = vor.u32 %v892, %v893
      %vm895 = vcmp.lt.s32.totalorder %v876, 1
      %vm896 = vcmp.lt.s32.totalorder %v876, 2
      %vm897 = vcmp.lt.s32.totalorder %v876, 3
      %vm898 = vcmp.lt.s32.totalorder %v876, 4
      %v899 = vsel %vm895, %v879, %v882
      %v900 = vsel %vm898, %v888, 2102212464
      %v901 = vsel %vm897, %v885, %v900
      %v902 = vsel %vm896, %v899, %v901
      %v903 = vsel %vm895, %v882, %v885
      %v904 = vsel %vm898, %v891, 920167782
      %v905 = vsel %vm897, %v888, %v904
      %v906 = vsel %vm896, %v903, %v905
      %v907 = vsel %vm895, %v885, %v888
      %v908 = vsel %vm898, %v894, 1326507024
      %v909 = vsel %vm897, %v891, %v908
      %v910 = vsel %vm896, %v907, %v909
      %v911 = vshll.u32 %v871, 8
      %v912 = vmul.u32.u64.compose %v911, %v910
      %v913 = vextract.low.u32 %v912
      %v914 = vextract.high.u32 %v912
      %v915 = vmul.u32.u64.compose %v911, %v906
      %v916 = vextract.low.u32 %v915
      %v917 = vextract.high.u32 %v915
      %v918 = vmul.u32 %v911, %v902
      %v919 = vadd.s32 %v914, %v916
      %vm920 = vc.u32 %v914, %v916
      %v921 = vadd.s32 %v917, 1
      %v922 = vsel %vm920, %v921, %v917
      %v923 = vadd.s32 %v918, %v922
      %v924 = vadd.s32 %v923, 536870912
      %v925 = vshrl.u32 %v924, 30
      %v926 = vshll.u32 %v925, 30
      %v927 = vsub.s32 %v923, %v926
      %vm928 = vcmp.lt.s32.totalorder %v927, 0
      %v929 = vsub.s32 0, %v927
      %v930 = vsel %vm928, %v929, %v927
      %v931 = vclz %v930
      %v932 = vsub.s32 %v931, 2
      %vm933 = vcmp.gt.s32.totalorder 0, %v932
      %v934 = vsel %vm933, 0, %v932
      %v935 = vsub.s32 32, %v934
      %v936 = vshll.u32 %v927, %v934
      %v937 = vshrl.u32 %v919, %v935
      %v938 = vor.u32 %v936, %v937
      %v939 = vsub.s32 4294967266, %v934
      %v940 = vadd.s32 %v939, 127
      %v941 = vshll.u32 %v940, 23
      %v942 = vor.u32 4788187, %v941
      %v943 = vand.u32 2147483647, %v942
      %v945 = vcvt.s32.f32 %v938
      %v946 = vmul.f32 %v945, %v943
      %v947 = vxor.u32 %v946, 2147483648
      %v948 = vsel %vm865, %v947, %v946
      %v949 = vsub.s32 4, %v925
      %v950 = vsel %vm865, %v949, %v925
      %v951 = vsel %vm864, %v550, %v948
      %v952 = vsel %vm864, 0, %v950
      %v953 = vcosq.f32.pop %v951
      %v954 = vsinq.f32.pop %v951
      %vm955 = vweird.f32 %v550
      %v956 = vadd.s32 %v952, 3
      %v957 = vand.u32 %v956, 3
      %vm958 = vcmp.lt.s32.totalorder %v957, 2
      %vm959 = vcmp.eq.s32.totalorder %v957, 0
      %v960 = vxor.u32 %v954, 2147483648
      %v961 = vsel %vm959, %v953, %v960
      %vm962 = vcmp.eq.s32.totalorder %v957, 2
      %v963 = vxor.u32 %v953, 2147483648
      %v964 = vsel %vm962, %v963, %v954
      %v965 = vsel %vm958, %v961, %v964
      %v966 = vsel %vm955, nan, %v965
      %v967 = vld [vmem:[%s402] sm:$0xff]
      %v968 = vld [vmem:[%s402 + $0x8] sm:$0xff]
      %969 = vrot.lane.b32.xlu0 %v967, 127
      %v970 = vpop.permute.xlu0 %969
      %971 = vrot.lane.b32.xlu0 %v968, 127
      %v972 = vpop.permute.xlu0 %971
      %973 = vrot.lane.b32.xlu0 %v967, 1
      %v974 = vpop.permute.xlu0 %973
      %975 = vrot.lane.b32.xlu0 %v968, 1
      %v976 = vpop.permute.xlu0 %975
      %v977 = vsel %vm469, %v970, %v974
      %v978 = vsel %vm469, %v972, %v976
      %v979 = vmul.f32 %v967, %v655
      %v980 = vmul.f32 %v968, %v758
      %v981 = vmul.f32 %v977, %v862
      %v982 = vmul.f32 %v978, %v966
      %v983 = vadd.f32 %v979, %v981
      %v984 = vadd.f32 %v980, %v982
      %985 = vst [vmem:[%s434] sm:$0xff] %v983
      %986 = vst [vmem:[%s434 + $0x8] sm:$0xff] %v984
      %v987 = vld [vmem:[%s418] sm:$0xff]
      %v988 = vld [vmem:[%s418 + $0x8] sm:$0xff]
      %989 = vrot.lane.b32.xlu0 %v987, 127
      %v990 = vpop.permute.xlu0 %989
      %991 = vrot.lane.b32.xlu0 %v988, 127
      %v992 = vpop.permute.xlu0 %991
      %993 = vrot.lane.b32.xlu0 %v987, 1
      %v994 = vpop.permute.xlu0 %993
      %995 = vrot.lane.b32.xlu0 %v988, 1
      %v996 = vpop.permute.xlu0 %995
      %v997 = vsel %vm469, %v990, %v994
      %v998 = vsel %vm469, %v992, %v996
      %v999 = vmul.f32 %v987, %v655
      %v1000 = vmul.f32 %v988, %v758
      %v1001 = vmul.f32 %v997, %v862
      %v1002 = vmul.f32 %v998, %v966
      %v1003 = vadd.f32 %v999, %v1001
      %v1004 = vadd.f32 %v1000, %v1002
      %1005 = vst [vmem:[%s450] sm:$0xff] %v1003
      %1006 = vst [vmem:[%s450 + $0x8] sm:$0xff] %v1004
      %s1007 = scalar_lea.vmem %s387, 8
      %v1008 = vld [vmem:[%s1007] sm:$0xff]
      %1009 = vmatprep.subr.mxu0 0.0
      %1010 = vmatpush1.msra.mxu0 0.0
      %1011 = vmatprep.subr.mxu0 0.0
      %1012 = vmatpush1.msra.mxu0 0.0
      %1013 = vmatprep.subr.mxu0 0.0
      %1014 = vmatpush1.msra.mxu0 0.0
      %1015 = vmatprep.subr.mxu0 0.0
      %1016 = vmatpush1.msra.mxu0 0.0
      %1017 = vmatprep.subr.mxu0 0.0
      %1018 = vmatpush1.msra.mxu0 0.0
      %1019 = vmatprep.subr.mxu0 0.0
      %1020 = vmatpush1.msra.mxu0 0.0
      %1021 = vmatprep.subr.mxu0 0.0
      %1022 = vmatpush1.msra.mxu0 0.0
      %1023 = vmatprep.subr.mxu0 0.0
      %1024 = vmatpush1.msra.mxu0 0.0
      %1025 = vmatprep.subr.mxu0 0.0
      %1026 = vmatpush1.msra.mxu0 0.0
      %1027 = vmatprep.subr.mxu0 0.0
      %1028 = vmatpush1.msra.mxu0 0.0
      %1029 = vmatprep.subr.mxu0 0.0
      %1030 = vmatpush1.msra.mxu0 0.0
      %1031 = vmatprep.subr.mxu0 0.0
      %1032 = vmatpush1.msra.mxu0 0.0
      %1033 = vmatprep.subr.mxu0 0.0
      %1034 = vmatpush1.msra.mxu0 0.0
      %1035 = vmatprep.subr.mxu0 0.0
      %1036 = vmatpush1.msra.mxu0 0.0
      %1037 = vmatprep.subr.mxu0 0.0
      %1038 = vmatpush1.msra.mxu0 0.0
      %1039 = vmatprep.subr.mxu0 0.0
      %1040 = vmatpush1.msra.mxu0 %v1008
      %1041 = vmatprep.subr.mxu0 0.0
      %1042 = vmatpush2.msra.mxu0 0.0
      %1043 = vmatprep.subr.mxu0 0.0
      %1044 = vmatpush2.msra.mxu0 0.0
      %1045 = vmatprep.subr.mxu0 0.0
      %1046 = vmatpush2.msra.mxu0 0.0
      %1047 = vmatprep.subr.mxu0 0.0
      %1048 = vmatpush2.msra.mxu0 0.0
      %1049 = vmatprep.subr.mxu0 0.0
      %1050 = vmatpush2.msra.mxu0 0.0
      %1051 = vmatprep.subr.mxu0 0.0
      %1052 = vmatpush2.msra.mxu0 0.0
      %1053 = vmatprep.subr.mxu0 0.0
      %1054 = vmatpush2.msra.mxu0 0.0
      %1055 = vmatprep.subr.mxu0 0.0
      %1056 = vmatpush2.msra.mxu0 0.0
      %1057 = vmatprep.subr.mxu0 0.0
      %1058 = vmatpush2.msra.mxu0 0.0
      %1059 = vmatprep.subr.mxu0 0.0
      %1060 = vmatpush2.msra.mxu0 0.0
      %1061 = vmatprep.subr.mxu0 0.0
      %1062 = vmatpush2.msra.mxu0 0.0
      %1063 = vmatprep.subr.mxu0 0.0
      %1064 = vmatpush2.msra.mxu0 0.0
      %1065 = vmatprep.subr.mxu0 0.0
      %1066 = vmatpush2.msra.mxu0 0.0
      %1067 = vmatprep.subr.mxu0 0.0
      %1068 = vmatpush2.msra.mxu0 0.0
      %1069 = vmatprep.subr.mxu0 0.0
      %1070 = vmatpush2.msra.mxu0 0.0
      %1071 = vmatprep.subr.mxu0 0.0
      %1072 = vmatpush2.msra.mxu0 0.0
      %1073 = vmatprep.mubr.f32.mxu0 0.0
      %1074 = vmatmul.mubr.f32.gmra.mxu0 %v473
      %v1075 = vpop.f32.mrf.mxu0
      %v1076 = vadd.f32 0.0, %v1075
      %v1077 = vpop.f32.mrf.mxu0
      %1078 = vmatprep.mubr.f32.mxu0 0.0
      %1079 = vmatmul.mubr.f32.gmra.mxu0 %v476
      %v1080 = vpop.f32.mrf.mxu0
      %v1081 = vadd.f32 0.0, %v1080
      %v1082 = vpop.f32.mrf.mxu0
      %1083 = vdwg.mxu0
      %v1084 = vand.u32 2147483647, %v1076
      %vm1085 = vcmp.le.f32.partialorder %v1084, 0.7853982
      %vm1086 = vcmp.lt.s32.totalorder %v1076, 0
      %v1087 = vand.u32 %v1076, 2139095040
      %v1088 = vshrl.u32 %v1087, 23
      %v1089 = vsub.s32 %v1088, 127
      %v1090 = vand.u32 2147483647, %v1076
      %v1091 = vand.u32 %v1090, 8388607
      %v1092 = vor.u32 %v1091, 8388608
      %v1093 = vsub.s32 0, %v1092
      %v1094 = vadd.s32 %v1089, 1
      %vm1095 = vcmp.gt.s32.totalorder %v1094, 0
      %v1096 = vsel %vm1095, %v1094, 0
      %v1097 = vshrl.u32 %v1096, 5
      %v1098 = vand.u32 %v1096, 31
      %v1099 = vsub.s32 32, %v1098
      %v1100 = vshrl.u32 683565275, %v1099
      %v1101 = vshll.u32 683565275, %v1098
      %v1102 = vshrl.u32 2475754826, %v1099
      %v1103 = vor.u32 %v1101, %v1102
      %v1104 = vshll.u32 2475754826, %v1098
      %v1105 = vshrl.u32 2131351028, %v1099
      %v1106 = vor.u32 %v1104, %v1105
      %v1107 = vshll.u32 2131351028, %v1098
      %v1108 = vshrl.u32 2102212464, %v1099
      %v1109 = vor.u32 %v1107, %v1108
      %v1110 = vshll.u32 2102212464, %v1098
      %v1111 = vshrl.u32 920167782, %v1099
      %v1112 = vor.u32 %v1110, %v1111
      %v1113 = vshll.u32 920167782, %v1098
      %v1114 = vshrl.u32 1326507024, %v1099
      %v1115 = vor.u32 %v1113, %v1114
      %vm1116 = vcmp.lt.s32.totalorder %v1097, 1
      %vm1117 = vcmp.lt.s32.totalorder %v1097, 2
      %vm1118 = vcmp.lt.s32.totalorder %v1097, 3
      %vm1119 = vcmp.lt.s32.totalorder %v1097, 4
      %v1120 = vsel %vm1116, %v1100, %v1103
      %v1121 = vsel %vm1119, %v1109, 2102212464
      %v1122 = vsel %vm1118, %v1106, %v1121
      %v1123 = vsel %vm1117, %v1120, %v1122
      %v1124 = vsel %vm1116, %v1103, %v1106
      %v1125 = vsel %vm1119, %v1112, 920167782
      %v1126 = vsel %vm1118, %v1109, %v1125
      %v1127 = vsel %vm1117, %v1124, %v1126
      %v1128 = vsel %vm1116, %v1106, %v1109
      %v1129 = vsel %vm1119, %v1115, 1326507024
      %v1130 = vsel %vm1118, %v1112, %v1129
      %v1131 = vsel %vm1117, %v1128, %v1130
      %v1132 = vshll.u32 %v1092, 8
      %v1133 = vmul.u32.u64.compose %v1132, %v1131
      %v1134 = vextract.low.u32 %v1133
      %v1135 = vextract.high.u32 %v1133
      %v1136 = vmul.u32.u64.compose %v1132, %v1127
      %v1137 = vextract.low.u32 %v1136
      %v1138 = vextract.high.u32 %v1136
      %v1139 = vmul.u32 %v1132, %v1123
      %v1140 = vadd.s32 %v1135, %v1137
      %vm1141 = vc.u32 %v1135, %v1137
      %v1142 = vadd.s32 %v1138, 1
      %v1143 = vsel %vm1141, %v1142, %v1138
      %v1144 = vadd.s32 %v1139, %v1143
      %v1145 = vadd.s32 %v1144, 536870912
      %v1146 = vshrl.u32 %v1145, 30
      %v1147 = vshll.u32 %v1146, 30
      %v1148 = vsub.s32 %v1144, %v1147
      %vm1149 = vcmp.lt.s32.totalorder %v1148, 0
      %v1150 = vsub.s32 0, %v1148
      %v1151 = vsel %vm1149, %v1150, %v1148
      %v1152 = vclz %v1151
      %v1153 = vsub.s32 %v1152, 2
      %vm1154 = vcmp.gt.s32.totalorder 0, %v1153
      %v1155 = vsel %vm1154, 0, %v1153
      %v1156 = vsub.s32 32, %v1155
      %v1157 = vshll.u32 %v1148, %v1155
      %v1158 = vshrl.u32 %v1140, %v1156
      %v1159 = vor.u32 %v1157, %v1158
      %v1160 = vsub.s32 4294967266, %v1155
      %v1161 = vadd.s32 %v1160, 127
      %v1162 = vshll.u32 %v1161, 23
      %v1163 = vor.u32 4788187, %v1162
      %v1164 = vand.u32 2147483647, %v1163
      %v1166 = vcvt.s32.f32 %v1159
      %v1167 = vmul.f32 %v1166, %v1164
      %v1168 = vxor.u32 %v1167, 2147483648
      %v1169 = vsel %vm1086, %v1168, %v1167
      %v1170 = vsub.s32 4, %v1146
      %v1171 = vsel %vm1086, %v1170, %v1146
      %v1172 = vsel %vm1085, %v1076, %v1169
      %v1173 = vsel %vm1085, 0, %v1171
      %v1174 = vcosq.f32.pop %v1172
      %v1175 = vsinq.f32.pop %v1172
      %vm1176 = vweird.f32 %v1076
      %v1177 = vand.u32 %v1173, 3
      %vm1178 = vcmp.lt.s32.totalorder %v1177, 2
      %vm1179 = vcmp.eq.s32.totalorder %v1177, 0
      %v1180 = vxor.u32 %v1175, 2147483648
      %v1181 = vsel %vm1179, %v1174, %v1180
      %vm1182 = vcmp.eq.s32.totalorder %v1177, 2
      %v1183 = vxor.u32 %v1174, 2147483648
      %v1184 = vsel %vm1182, %v1183, %v1175
      %v1185 = vsel %vm1178, %v1181, %v1184
      %v1186 = vsel %vm1176, nan, %v1185
      %v1187 = vand.u32 2147483647, %v1081
      %vm1188 = vcmp.le.f32.partialorder %v1187, 0.7853982
      %vm1189 = vcmp.lt.s32.totalorder %v1081, 0
      %v1190 = vand.u32 %v1081, 2139095040
      %v1191 = vshrl.u32 %v1190, 23
      %v1192 = vsub.s32 %v1191, 127
      %v1193 = vand.u32 2147483647, %v1081
      %v1194 = vand.u32 %v1193, 8388607
      %v1195 = vor.u32 %v1194, 8388608
      %v1196 = vsub.s32 0, %v1195
      %v1197 = vadd.s32 %v1192, 1
      %vm1198 = vcmp.gt.s32.totalorder %v1197, 0
      %v1199 = vsel %vm1198, %v1197, 0
      %v1200 = vshrl.u32 %v1199, 5
      %v1201 = vand.u32 %v1199, 31
      %v1202 = vsub.s32 32, %v1201
      %v1203 = vshrl.u32 683565275, %v1202
      %v1204 = vshll.u32 683565275, %v1201
      %v1205 = vshrl.u32 2475754826, %v1202
      %v1206 = vor.u32 %v1204, %v1205
      %v1207 = vshll.u32 2475754826, %v1201
      %v1208 = vshrl.u32 2131351028, %v1202
      %v1209 = vor.u32 %v1207, %v1208
      %v1210 = vshll.u32 2131351028, %v1201
      %v1211 = vshrl.u32 2102212464, %v1202
      %v1212 = vor.u32 %v1210, %v1211
      %v1213 = vshll.u32 2102212464, %v1201
      %v1214 = vshrl.u32 920167782, %v1202
      %v1215 = vor.u32 %v1213, %v1214
      %v1216 = vshll.u32 920167782, %v1201
      %v1217 = vshrl.u32 1326507024, %v1202
      %v1218 = vor.u32 %v1216, %v1217
      %vm1219 = vcmp.lt.s32.totalorder %v1200, 1
      %vm1220 = vcmp.lt.s32.totalorder %v1200, 2
      %vm1221 = vcmp.lt.s32.totalorder %v1200, 3
      %vm1222 = vcmp.lt.s32.totalorder %v1200, 4
      %v1223 = vsel %vm1219, %v1203, %v1206
      %v1224 = vsel %vm1222, %v1212, 2102212464
      %v1225 = vsel %vm1221, %v1209, %v1224
      %v1226 = vsel %vm1220, %v1223, %v1225
      %v1227 = vsel %vm1219, %v1206, %v1209
      %v1228 = vsel %vm1222, %v1215, 920167782
      %v1229 = vsel %vm1221, %v1212, %v1228
      %v1230 = vsel %vm1220, %v1227, %v1229
      %v1231 = vsel %vm1219, %v1209, %v1212
      %v1232 = vsel %vm1222, %v1218, 1326507024
      %v1233 = vsel %vm1221, %v1215, %v1232
      %v1234 = vsel %vm1220, %v1231, %v1233
      %v1235 = vshll.u32 %v1195, 8
      %v1236 = vmul.u32.u64.compose %v1235, %v1234
      %v1237 = vextract.low.u32 %v1236
      %v1238 = vextract.high.u32 %v1236
      %v1239 = vmul.u32.u64.compose %v1235, %v1230
      %v1240 = vextract.low.u32 %v1239
      %v1241 = vextract.high.u32 %v1239
      %v1242 = vmul.u32 %v1235, %v1226
      %v1243 = vadd.s32 %v1238, %v1240
      %vm1244 = vc.u32 %v1238, %v1240
      %v1245 = vadd.s32 %v1241, 1
      %v1246 = vsel %vm1244, %v1245, %v1241
      %v1247 = vadd.s32 %v1242, %v1246
      %v1248 = vadd.s32 %v1247, 536870912
      %v1249 = vshrl.u32 %v1248, 30
      %v1250 = vshll.u32 %v1249, 30
      %v1251 = vsub.s32 %v1247, %v1250
      %vm1252 = vcmp.lt.s32.totalorder %v1251, 0
      %v1253 = vsub.s32 0, %v1251
      %v1254 = vsel %vm1252, %v1253, %v1251
      %v1255 = vclz %v1254
      %v1256 = vsub.s32 %v1255, 2
      %vm1257 = vcmp.gt.s32.totalorder 0, %v1256
      %v1258 = vsel %vm1257, 0, %v1256
      %v1259 = vsub.s32 32, %v1258
      %v1260 = vshll.u32 %v1251, %v1258
      %v1261 = vshrl.u32 %v1243, %v1259
      %v1262 = vor.u32 %v1260, %v1261
      %v1263 = vsub.s32 4294967266, %v1258
      %v1264 = vadd.s32 %v1263, 127
      %v1265 = vshll.u32 %v1264, 23
      %v1266 = vor.u32 4788187, %v1265
      %v1267 = vand.u32 2147483647, %v1266
      %v1269 = vcvt.s32.f32 %v1262
      %v1270 = vmul.f32 %v1269, %v1267
      %v1271 = vxor.u32 %v1270, 2147483648
      %v1272 = vsel %vm1189, %v1271, %v1270
      %v1273 = vsub.s32 4, %v1249
      %v1274 = vsel %vm1189, %v1273, %v1249
      %v1275 = vsel %vm1188, %v1081, %v1272
      %v1276 = vsel %vm1188, 0, %v1274
      %v1277 = vcosq.f32.pop %v1275
      %v1278 = vsinq.f32.pop %v1275
      %vm1279 = vweird.f32 %v1081
      %v1280 = vand.u32 %v1276, 3
      %vm1281 = vcmp.lt.s32.totalorder %v1280, 2
      %vm1282 = vcmp.eq.s32.totalorder %v1280, 0
      %v1283 = vxor.u32 %v1278, 2147483648
      %v1284 = vsel %vm1282, %v1277, %v1283
      %vm1285 = vcmp.eq.s32.totalorder %v1280, 2
      %v1286 = vxor.u32 %v1277, 2147483648
      %v1287 = vsel %vm1285, %v1286, %v1278
      %v1288 = vsel %vm1281, %v1284, %v1287
      %v1289 = vsel %vm1279, nan, %v1288
      %v1290 = vand.u32 2147483647, %v1076
      %vm1291 = vcmp.le.f32.partialorder %v1290, 0.7853982
      %vm1292 = vcmp.lt.s32.totalorder %v1076, 0
      %v1293 = vand.u32 %v1076, 2139095040
      %v1294 = vshrl.u32 %v1293, 23
      %v1295 = vsub.s32 %v1294, 127
      %v1296 = vand.u32 2147483647, %v1076
      %v1297 = vand.u32 %v1296, 8388607
      %v1298 = vor.u32 %v1297, 8388608
      %v1299 = vsub.s32 0, %v1298
      %v1300 = vadd.s32 %v1295, 1
      %vm1301 = vcmp.gt.s32.totalorder %v1300, 0
      %v1302 = vsel %vm1301, %v1300, 0
      %v1303 = vshrl.u32 %v1302, 5
      %v1304 = vand.u32 %v1302, 31
      %v1305 = vsub.s32 32, %v1304
      %v1306 = vshrl.u32 683565275, %v1305
      %v1307 = vshll.u32 683565275, %v1304
      %v1308 = vshrl.u32 2475754826, %v1305
      %v1309 = vor.u32 %v1307, %v1308
      %v1310 = vshll.u32 2475754826, %v1304
      %v1311 = vshrl.u32 2131351028, %v1305
      %v1312 = vor.u32 %v1310, %v1311
      %v1313 = vshll.u32 2131351028, %v1304
      %v1314 = vshrl.u32 2102212464, %v1305
      %v1315 = vor.u32 %v1313, %v1314
      %v1316 = vshll.u32 2102212464, %v1304
      %v1317 = vshrl.u32 920167782, %v1305
      %v1318 = vor.u32 %v1316, %v1317
      %v1319 = vshll.u32 920167782, %v1304
      %v1320 = vshrl.u32 1326507024, %v1305
      %v1321 = vor.u32 %v1319, %v1320
      %vm1322 = vcmp.lt.s32.totalorder %v1303, 1
      %vm1323 = vcmp.lt.s32.totalorder %v1303, 2
      %vm1324 = vcmp.lt.s32.totalorder %v1303, 3
      %vm1325 = vcmp.lt.s32.totalorder %v1303, 4
      %v1326 = vsel %vm1322, %v1306, %v1309
      %v1327 = vsel %vm1325, %v1315, 2102212464
      %v1328 = vsel %vm1324, %v1312, %v1327
      %v1329 = vsel %vm1323, %v1326, %v1328
      %v1330 = vsel %vm1322, %v1309, %v1312
      %v1331 = vsel %vm1325, %v1318, 920167782
      %v1332 = vsel %vm1324, %v1315, %v1331
      %v1333 = vsel %vm1323, %v1330, %v1332
      %v1334 = vsel %vm1322, %v1312, %v1315
      %v1335 = vsel %vm1325, %v1321, 1326507024
      %v1336 = vsel %vm1324, %v1318, %v1335
      %v1337 = vsel %vm1323, %v1334, %v1336
      %v1338 = vshll.u32 %v1298, 8
      %v1339 = vmul.u32.u64.compose %v1338, %v1337
      %v1340 = vextract.low.u32 %v1339
      %v1341 = vextract.high.u32 %v1339
      %v1342 = vmul.u32.u64.compose %v1338, %v1333
      %v1343 = vextract.low.u32 %v1342
      %v1344 = vextract.high.u32 %v1342
      %v1345 = vmul.u32 %v1338, %v1329
      %v1346 = vadd.s32 %v1341, %v1343
      %vm1347 = vc.u32 %v1341, %v1343
      %v1348 = vadd.s32 %v1344, 1
      %v1349 = vsel %vm1347, %v1348, %v1344
      %v1350 = vadd.s32 %v1345, %v1349
      %v1351 = vadd.s32 %v1350, 536870912
      %v1352 = vshrl.u32 %v1351, 30
      %v1353 = vshll.u32 %v1352, 30
      %v1354 = vsub.s32 %v1350, %v1353
      %vm1355 = vcmp.lt.s32.totalorder %v1354, 0
      %v1356 = vsub.s32 0, %v1354
      %v1357 = vsel %vm1355, %v1356, %v1354
      %v1358 = vclz %v1357
      %v1359 = vsub.s32 %v1358, 2
      %vm1360 = vcmp.gt.s32.totalorder 0, %v1359
      %v1361 = vsel %vm1360, 0, %v1359
      %v1362 = vsub.s32 32, %v1361
      %v1363 = vshll.u32 %v1354, %v1361
      %v1364 = vshrl.u32 %v1346, %v1362
      %v1365 = vor.u32 %v1363, %v1364
      %v1366 = vsub.s32 4294967266, %v1361
      %v1367 = vadd.s32 %v1366, 127
      %v1368 = vshll.u32 %v1367, 23
      %v1369 = vor.u32 4788187, %v1368
      %v1370 = vand.u32 2147483647, %v1369
      %v1372 = vcvt.s32.f32 %v1365
      %v1373 = vmul.f32 %v1372, %v1370
      %v1374 = vxor.u32 %v1373, 2147483648
      %v1375 = vsel %vm1292, %v1374, %v1373
      %v1376 = vsub.s32 4, %v1352
      %v1377 = vsel %vm1292, %v1376, %v1352
      %v1378 = vsel %vm1291, %v1076, %v1375
      %v1379 = vsel %vm1291, 0, %v1377
      %v1380 = vcosq.f32.pop %v1378
      %v1381 = vsinq.f32.pop %v1378
      %vm1382 = vweird.f32 %v1076
      %v1383 = vadd.s32 %v1379, 3
      %v1384 = vand.u32 %v1383, 3
      %vm1385 = vcmp.lt.s32.totalorder %v1384, 2
      %vm1386 = vcmp.eq.s32.totalorder %v1384, 0
      %v1387 = vxor.u32 %v1381, 2147483648
      %v1388 = vsel %vm1386, %v1380, %v1387
      %vm1389 = vcmp.eq.s32.totalorder %v1384, 2
      %v1390 = vxor.u32 %v1380, 2147483648
      %v1391 = vsel %vm1389, %v1390, %v1381
      %v1392 = vsel %vm1385, %v1388, %v1391
      %v1393 = vsel %vm1382, nan, %v1392
      %v1394 = vand.u32 2147483647, %v1081
      %vm1395 = vcmp.le.f32.partialorder %v1394, 0.7853982
      %vm1396 = vcmp.lt.s32.totalorder %v1081, 0
      %v1397 = vand.u32 %v1081, 2139095040
      %v1398 = vshrl.u32 %v1397, 23
      %v1399 = vsub.s32 %v1398, 127
      %v1400 = vand.u32 2147483647, %v1081
      %v1401 = vand.u32 %v1400, 8388607
      %v1402 = vor.u32 %v1401, 8388608
      %v1403 = vsub.s32 0, %v1402
      %v1404 = vadd.s32 %v1399, 1
      %vm1405 = vcmp.gt.s32.totalorder %v1404, 0
      %v1406 = vsel %vm1405, %v1404, 0
      %v1407 = vshrl.u32 %v1406, 5
      %v1408 = vand.u32 %v1406, 31
      %v1409 = vsub.s32 32, %v1408
      %v1410 = vshrl.u32 683565275, %v1409
      %v1411 = vshll.u32 683565275, %v1408
      %v1412 = vshrl.u32 2475754826, %v1409
      %v1413 = vor.u32 %v1411, %v1412
      %v1414 = vshll.u32 2475754826, %v1408
      %v1415 = vshrl.u32 2131351028, %v1409
      %v1416 = vor.u32 %v1414, %v1415
      %v1417 = vshll.u32 2131351028, %v1408
      %v1418 = vshrl.u32 2102212464, %v1409
      %v1419 = vor.u32 %v1417, %v1418
      %v1420 = vshll.u32 2102212464, %v1408
      %v1421 = vshrl.u32 920167782, %v1409
      %v1422 = vor.u32 %v1420, %v1421
      %v1423 = vshll.u32 920167782, %v1408
      %v1424 = vshrl.u32 1326507024, %v1409
      %v1425 = vor.u32 %v1423, %v1424
      %vm1426 = vcmp.lt.s32.totalorder %v1407, 1
      %vm1427 = vcmp.lt.s32.totalorder %v1407, 2
      %vm1428 = vcmp.lt.s32.totalorder %v1407, 3
      %vm1429 = vcmp.lt.s32.totalorder %v1407, 4
      %v1430 = vsel %vm1426, %v1410, %v1413
      %v1431 = vsel %vm1429, %v1419, 2102212464
      %v1432 = vsel %vm1428, %v1416, %v1431
      %v1433 = vsel %vm1427, %v1430, %v1432
      %v1434 = vsel %vm1426, %v1413, %v1416
      %v1435 = vsel %vm1429, %v1422, 920167782
      %v1436 = vsel %vm1428, %v1419, %v1435
      %v1437 = vsel %vm1427, %v1434, %v1436
      %v1438 = vsel %vm1426, %v1416, %v1419
      %v1439 = vsel %vm1429, %v1425, 1326507024
      %v1440 = vsel %vm1428, %v1422, %v1439
      %v1441 = vsel %vm1427, %v1438, %v1440
      %v1442 = vshll.u32 %v1402, 8
      %v1443 = vmul.u32.u64.compose %v1442, %v1441
      %v1444 = vextract.low.u32 %v1443
      %v1445 = vextract.high.u32 %v1443
      %v1446 = vmul.u32.u64.compose %v1442, %v1437
      %v1447 = vextract.low.u32 %v1446
      %v1448 = vextract.high.u32 %v1446
      %v1449 = vmul.u32 %v1442, %v1433
      %v1450 = vadd.s32 %v1445, %v1447
      %vm1451 = vc.u32 %v1445, %v1447
      %v1452 = vadd.s32 %v1448, 1
      %v1453 = vsel %vm1451, %v1452, %v1448
      %v1454 = vadd.s32 %v1449, %v1453
      %v1455 = vadd.s32 %v1454, 536870912
      %v1456 = vshrl.u32 %v1455, 30
      %v1457 = vshll.u32 %v1456, 30
      %v1458 = vsub.s32 %v1454, %v1457
      %vm1459 = vcmp.lt.s32.totalorder %v1458, 0
      %v1460 = vsub.s32 0, %v1458
      %v1461 = vsel %vm1459, %v1460, %v1458
      %v1462 = vclz %v1461
      %v1463 = vsub.s32 %v1462, 2
      %vm1464 = vcmp.gt.s32.totalorder 0, %v1463
      %v1465 = vsel %vm1464, 0, %v1463
      %v1466 = vsub.s32 32, %v1465
      %v1467 = vshll.u32 %v1458, %v1465
      %v1468 = vshrl.u32 %v1450, %v1466
      %v1469 = vor.u32 %v1467, %v1468
      %v1470 = vsub.s32 4294967266, %v1465
      %v1471 = vadd.s32 %v1470, 127
      %v1472 = vshll.u32 %v1471, 23
      %v1473 = vor.u32 4788187, %v1472
      %v1474 = vand.u32 2147483647, %v1473
      %v1476 = vcvt.s32.f32 %v1469
      %v1477 = vmul.f32 %v1476, %v1474
      %v1478 = vxor.u32 %v1477, 2147483648
      %v1479 = vsel %vm1396, %v1478, %v1477
      %v1480 = vsub.s32 4, %v1456
      %v1481 = vsel %vm1396, %v1480, %v1456
      %v1482 = vsel %vm1395, %v1081, %v1479
      %v1483 = vsel %vm1395, 0, %v1481
      %v1484 = vcosq.f32.pop %v1482
      %v1485 = vsinq.f32.pop %v1482
      %vm1486 = vweird.f32 %v1081
      %v1487 = vadd.s32 %v1483, 3
      %v1488 = vand.u32 %v1487, 3
      %vm1489 = vcmp.lt.s32.totalorder %v1488, 2
      %vm1490 = vcmp.eq.s32.totalorder %v1488, 0
      %v1491 = vxor.u32 %v1485, 2147483648
      %v1492 = vsel %vm1490, %v1484, %v1491
      %vm1493 = vcmp.eq.s32.totalorder %v1488, 2
      %v1494 = vxor.u32 %v1484, 2147483648
      %v1495 = vsel %vm1493, %v1494, %v1485
      %v1496 = vsel %vm1489, %v1492, %v1495
      %v1497 = vsel %vm1486, nan, %v1496
      %s1498 = scalar_lea.vmem %s402, 16
      %v1499 = vld [vmem:[%s1498] sm:$0xff]
      %v1500 = vld [vmem:[%s1498 + $0x8] sm:$0xff]
      %1501 = vrot.lane.b32.xlu0 %v1499, 127
      %v1502 = vpop.permute.xlu0 %1501
      %1503 = vrot.lane.b32.xlu0 %v1500, 127
      %v1504 = vpop.permute.xlu0 %1503
      %1505 = vrot.lane.b32.xlu0 %v1499, 1
      %v1506 = vpop.permute.xlu0 %1505
      %1507 = vrot.lane.b32.xlu0 %v1500, 1
      %v1508 = vpop.permute.xlu0 %1507
      %v1509 = vsel %vm469, %v1502, %v1506
      %v1510 = vsel %vm469, %v1504, %v1508
      %v1511 = vmul.f32 %v1499, %v1186
      %v1512 = vmul.f32 %v1500, %v1289
      %v1513 = vmul.f32 %v1509, %v1393
      %v1514 = vmul.f32 %v1510, %v1497
      %v1515 = vadd.f32 %v1511, %v1513
      %v1516 = vadd.f32 %v1512, %v1514
      %s1517 = scalar_lea.vmem %s434, 16
      %1518 = vst [vmem:[%s1517] sm:$0xff] %v1515
      %1519 = vst [vmem:[%s1517 + $0x8] sm:$0xff] %v1516
      %s1520 = scalar_lea.vmem %s418, 16
      %v1521 = vld [vmem:[%s1520] sm:$0xff]
      %v1522 = vld [vmem:[%s1520 + $0x8] sm:$0xff]
      %1523 = vrot.lane.b32.xlu0 %v1521, 127
      %v1524 = vpop.permute.xlu0 %1523
      %1525 = vrot.lane.b32.xlu0 %v1522, 127
      %v1526 = vpop.permute.xlu0 %1525
      %1527 = vrot.lane.b32.xlu0 %v1521, 1
      %v1528 = vpop.permute.xlu0 %1527
      %1529 = vrot.lane.b32.xlu0 %v1522, 1
      %v1530 = vpop.permute.xlu0 %1529
      %v1531 = vsel %vm469, %v1524, %v1528
      %v1532 = vsel %vm469, %v1526, %v1530
      %v1533 = vmul.f32 %v1521, %v1186
      %v1534 = vmul.f32 %v1522, %v1289
      %v1535 = vmul.f32 %v1531, %v1393
      %v1536 = vmul.f32 %v1532, %v1497
      %v1537 = vadd.f32 %v1533, %v1535
      %v1538 = vadd.f32 %v1534, %v1536
      %s1539 = scalar_lea.vmem %s450, 16
      %1540 = vst [vmem:[%s1539] sm:$0xff] %v1537
      %1541 = vst [vmem:[%s1539 + $0x8] sm:$0xff] %v1538
      %s1542 = scalar_lea.vmem %s387, 16
      %v1543 = vld [vmem:[%s1542] sm:$0xff]
      %1544 = vmatprep.subr.mxu0 0.0
      %1545 = vmatpush1.msra.mxu0 0.0
      %1546 = vmatprep.subr.mxu0 0.0
      %1547 = vmatpush1.msra.mxu0 0.0
      %1548 = vmatprep.subr.mxu0 0.0
      %1549 = vmatpush1.msra.mxu0 0.0
      %1550 = vmatprep.subr.mxu0 0.0
      %1551 = vmatpush1.msra.mxu0 0.0
      %1552 = vmatprep.subr.mxu0 0.0
      %1553 = vmatpush1.msra.mxu0 0.0
      %1554 = vmatprep.subr.mxu0 0.0
      %1555 = vmatpush1.msra.mxu0 0.0
      %1556 = vmatprep.subr.mxu0 0.0
      %1557 = vmatpush1.msra.mxu0 0.0
      %1558 = vmatprep.subr.mxu0 0.0
      %1559 = vmatpush1.msra.mxu0 0.0
      %1560 = vmatprep.subr.mxu0 0.0
      %1561 = vmatpush1.msra.mxu0 0.0
      %1562 = vmatprep.subr.mxu0 0.0
      %1563 = vmatpush1.msra.mxu0 0.0
      %1564 = vmatprep.subr.mxu0 0.0
      %1565 = vmatpush1.msra.mxu0 0.0
      %1566 = vmatprep.subr.mxu0 0.0
      %1567 = vmatpush1.msra.mxu0 0.0
      %1568 = vmatprep.subr.mxu0 0.0
      %1569 = vmatpush1.msra.mxu0 0.0
      %1570 = vmatprep.subr.mxu0 0.0
      %1571 = vmatpush1.msra.mxu0 0.0
      %1572 = vmatprep.subr.mxu0 0.0
      %1573 = vmatpush1.msra.mxu0 0.0
      %1574 = vmatprep.subr.mxu0 0.0
      %1575 = vmatpush1.msra.mxu0 %v1543
      %1576 = vmatprep.subr.mxu0 0.0
      %1577 = vmatpush2.msra.mxu0 0.0
      %1578 = vmatprep.subr.mxu0 0.0
      %1579 = vmatpush2.msra.mxu0 0.0
      %1580 = vmatprep.subr.mxu0 0.0
      %1581 = vmatpush2.msra.mxu0 0.0
      %1582 = vmatprep.subr.mxu0 0.0
      %1583 = vmatpush2.msra.mxu0 0.0
      %1584 = vmatprep.subr.mxu0 0.0
      %1585 = vmatpush2.msra.mxu0 0.0
      %1586 = vmatprep.subr.mxu0 0.0
      %1587 = vmatpush2.msra.mxu0 0.0
      %1588 = vmatprep.subr.mxu0 0.0
      %1589 = vmatpush2.msra.mxu0 0.0
      %1590 = vmatprep.subr.mxu0 0.0
      %1591 = vmatpush2.msra.mxu0 0.0
      %1592 = vmatprep.subr.mxu0 0.0
      %1593 = vmatpush2.msra.mxu0 0.0
      %1594 = vmatprep.subr.mxu0 0.0
      %1595 = vmatpush2.msra.mxu0 0.0
      %1596 = vmatprep.subr.mxu0 0.0
      %1597 = vmatpush2.msra.mxu0 0.0
      %1598 = vmatprep.subr.mxu0 0.0
      %1599 = vmatpush2.msra.mxu0 0.0
      %1600 = vmatprep.subr.mxu0 0.0
      %1601 = vmatpush2.msra.mxu0 0.0
      %1602 = vmatprep.subr.mxu0 0.0
      %1603 = vmatpush2.msra.mxu0 0.0
      %1604 = vmatprep.subr.mxu0 0.0
      %1605 = vmatpush2.msra.mxu0 0.0
      %1606 = vmatprep.subr.mxu0 0.0
      %1607 = vmatpush2.msra.mxu0 0.0
      %1608 = vmatprep.mubr.f32.mxu0 0.0
      %1609 = vmatmul.mubr.f32.gmra.mxu0 %v473
      %v1610 = vpop.f32.mrf.mxu0
      %v1611 = vadd.f32 0.0, %v1610
      %v1612 = vpop.f32.mrf.mxu0
      %1613 = vmatprep.mubr.f32.mxu0 0.0
      %1614 = vmatmul.mubr.f32.gmra.mxu0 %v476
      %v1615 = vpop.f32.mrf.mxu0
      %v1616 = vadd.f32 0.0, %v1615
      %v1617 = vpop.f32.mrf.mxu0
      %1618 = vdwg.mxu0
      %v1619 = vand.u32 2147483647, %v1611
      %vm1620 = vcmp.le.f32.partialorder %v1619, 0.7853982
      %vm1621 = vcmp.lt.s32.totalorder %v1611, 0
      %v1622 = vand.u32 %v1611, 2139095040
      %v1623 = vshrl.u32 %v1622, 23
      %v1624 = vsub.s32 %v1623, 127
      %v1625 = vand.u32 2147483647, %v1611
      %v1626 = vand.u32 %v1625, 8388607
      %v1627 = vor.u32 %v1626, 8388608
      %v1628 = vsub.s32 0, %v1627
      %v1629 = vadd.s32 %v1624, 1
      %vm1630 = vcmp.gt.s32.totalorder %v1629, 0
      %v1631 = vsel %vm1630, %v1629, 0
      %v1632 = vshrl.u32 %v1631, 5
      %v1633 = vand.u32 %v1631, 31
      %v1634 = vsub.s32 32, %v1633
      %v1635 = vshrl.u32 683565275, %v1634
      %v1636 = vshll.u32 683565275, %v1633
      %v1637 = vshrl.u32 2475754826, %v1634
      %v1638 = vor.u32 %v1636, %v1637
      %v1639 = vshll.u32 2475754826, %v1633
      %v1640 = vshrl.u32 2131351028, %v1634
      %v1641 = vor.u32 %v1639, %v1640
      %v1642 = vshll.u32 2131351028, %v1633
      %v1643 = vshrl.u32 2102212464, %v1634
      %v1644 = vor.u32 %v1642, %v1643
      %v1645 = vshll.u32 2102212464, %v1633
      %v1646 = vshrl.u32 920167782, %v1634
      %v1647 = vor.u32 %v1645, %v1646
      %v1648 = vshll.u32 920167782, %v1633
      %v1649 = vshrl.u32 1326507024, %v1634
      %v1650 = vor.u32 %v1648, %v1649
      %vm1651 = vcmp.lt.s32.totalorder %v1632, 1
      %vm1652 = vcmp.lt.s32.totalorder %v1632, 2
      %vm1653 = vcmp.lt.s32.totalorder %v1632, 3
      %vm1654 = vcmp.lt.s32.totalorder %v1632, 4
      %v1655 = vsel %vm1651, %v1635, %v1638
      %v1656 = vsel %vm1654, %v1644, 2102212464
      %v1657 = vsel %vm1653, %v1641, %v1656
      %v1658 = vsel %vm1652, %v1655, %v1657
      %v1659 = vsel %vm1651, %v1638, %v1641
      %v1660 = vsel %vm1654, %v1647, 920167782
      %v1661 = vsel %vm1653, %v1644, %v1660
      %v1662 = vsel %vm1652, %v1659, %v1661
      %v1663 = vsel %vm1651, %v1641, %v1644
      %v1664 = vsel %vm1654, %v1650, 1326507024
      %v1665 = vsel %vm1653, %v1647, %v1664
      %v1666 = vsel %vm1652, %v1663, %v1665
      %v1667 = vshll.u32 %v1627, 8
      %v1668 = vmul.u32.u64.compose %v1667, %v1666
      %v1669 = vextract.low.u32 %v1668
      %v1670 = vextract.high.u32 %v1668
      %v1671 = vmul.u32.u64.compose %v1667, %v1662
      %v1672 = vextract.low.u32 %v1671
      %v1673 = vextract.high.u32 %v1671
      %v1674 = vmul.u32 %v1667, %v1658
      %v1675 = vadd.s32 %v1670, %v1672
      %vm1676 = vc.u32 %v1670, %v1672
      %v1677 = vadd.s32 %v1673, 1
      %v1678 = vsel %vm1676, %v1677, %v1673
      %v1679 = vadd.s32 %v1674, %v1678
      %v1680 = vadd.s32 %v1679, 536870912
      %v1681 = vshrl.u32 %v1680, 30
      %v1682 = vshll.u32 %v1681, 30
      %v1683 = vsub.s32 %v1679, %v1682
      %vm1684 = vcmp.lt.s32.totalorder %v1683, 0
      %v1685 = vsub.s32 0, %v1683
      %v1686 = vsel %vm1684, %v1685, %v1683
      %v1687 = vclz %v1686
      %v1688 = vsub.s32 %v1687, 2
      %vm1689 = vcmp.gt.s32.totalorder 0, %v1688
      %v1690 = vsel %vm1689, 0, %v1688
      %v1691 = vsub.s32 32, %v1690
      %v1692 = vshll.u32 %v1683, %v1690
      %v1693 = vshrl.u32 %v1675, %v1691
      %v1694 = vor.u32 %v1692, %v1693
      %v1695 = vsub.s32 4294967266, %v1690
      %v1696 = vadd.s32 %v1695, 127
      %v1697 = vshll.u32 %v1696, 23
      %v1698 = vor.u32 4788187, %v1697
      %v1699 = vand.u32 2147483647, %v1698
      %v1701 = vcvt.s32.f32 %v1694
      %v1702 = vmul.f32 %v1701, %v1699
      %v1703 = vxor.u32 %v1702, 2147483648
      %v1704 = vsel %vm1621, %v1703, %v1702
      %v1705 = vsub.s32 4, %v1681
      %v1706 = vsel %vm1621, %v1705, %v1681
      %v1707 = vsel %vm1620, %v1611, %v1704
      %v1708 = vsel %vm1620, 0, %v1706
      %v1709 = vcosq.f32.pop %v1707
      %v1710 = vsinq.f32.pop %v1707
      %vm1711 = vweird.f32 %v1611
      %v1712 = vand.u32 %v1708, 3
      %vm1713 = vcmp.lt.s32.totalorder %v1712, 2
      %vm1714 = vcmp.eq.s32.totalorder %v1712, 0
      %v1715 = vxor.u32 %v1710, 2147483648
      %v1716 = vsel %vm1714, %v1709, %v1715
      %vm1717 = vcmp.eq.s32.totalorder %v1712, 2
      %v1718 = vxor.u32 %v1709, 2147483648
      %v1719 = vsel %vm1717, %v1718, %v1710
      %v1720 = vsel %vm1713, %v1716, %v1719
      %v1721 = vsel %vm1711, nan, %v1720
      %v1722 = vand.u32 2147483647, %v1616
      %vm1723 = vcmp.le.f32.partialorder %v1722, 0.7853982
      %vm1724 = vcmp.lt.s32.totalorder %v1616, 0
      %v1725 = vand.u32 %v1616, 2139095040
      %v1726 = vshrl.u32 %v1725, 23
      %v1727 = vsub.s32 %v1726, 127
      %v1728 = vand.u32 2147483647, %v1616
      %v1729 = vand.u32 %v1728, 8388607
      %v1730 = vor.u32 %v1729, 8388608
      %v1731 = vsub.s32 0, %v1730
      %v1732 = vadd.s32 %v1727, 1
      %vm1733 = vcmp.gt.s32.totalorder %v1732, 0
      %v1734 = vsel %vm1733, %v1732, 0
      %v1735 = vshrl.u32 %v1734, 5
      %v1736 = vand.u32 %v1734, 31
      %v1737 = vsub.s32 32, %v1736
      %v1738 = vshrl.u32 683565275, %v1737
      %v1739 = vshll.u32 683565275, %v1736
      %v1740 = vshrl.u32 2475754826, %v1737
      %v1741 = vor.u32 %v1739, %v1740
      %v1742 = vshll.u32 2475754826, %v1736
      %v1743 = vshrl.u32 2131351028, %v1737
      %v1744 = vor.u32 %v1742, %v1743
      %v1745 = vshll.u32 2131351028, %v1736
      %v1746 = vshrl.u32 2102212464, %v1737
      %v1747 = vor.u32 %v1745, %v1746
      %v1748 = vshll.u32 2102212464, %v1736
      %v1749 = vshrl.u32 920167782, %v1737
      %v1750 = vor.u32 %v1748, %v1749
      %v1751 = vshll.u32 920167782, %v1736
      %v1752 = vshrl.u32 1326507024, %v1737
      %v1753 = vor.u32 %v1751, %v1752
      %vm1754 = vcmp.lt.s32.totalorder %v1735, 1
      %vm1755 = vcmp.lt.s32.totalorder %v1735, 2
      %vm1756 = vcmp.lt.s32.totalorder %v1735, 3
      %vm1757 = vcmp.lt.s32.totalorder %v1735, 4
      %v1758 = vsel %vm1754, %v1738, %v1741
      %v1759 = vsel %vm1757, %v1747, 2102212464
      %v1760 = vsel %vm1756, %v1744, %v1759
      %v1761 = vsel %vm1755, %v1758, %v1760
      %v1762 = vsel %vm1754, %v1741, %v1744
      %v1763 = vsel %vm1757, %v1750, 920167782
      %v1764 = vsel %vm1756, %v1747, %v1763
      %v1765 = vsel %vm1755, %v1762, %v1764
      %v1766 = vsel %vm1754, %v1744, %v1747
      %v1767 = vsel %vm1757, %v1753, 1326507024
      %v1768 = vsel %vm1756, %v1750, %v1767
      %v1769 = vsel %vm1755, %v1766, %v1768
      %v1770 = vshll.u32 %v1730, 8
      %v1771 = vmul.u32.u64.compose %v1770, %v1769
      %v1772 = vextract.low.u32 %v1771
      %v1773 = vextract.high.u32 %v1771
      %v1774 = vmul.u32.u64.compose %v1770, %v1765
      %v1775 = vextract.low.u32 %v1774
      %v1776 = vextract.high.u32 %v1774
      %v1777 = vmul.u32 %v1770, %v1761
      %v1778 = vadd.s32 %v1773, %v1775
      %vm1779 = vc.u32 %v1773, %v1775
      %v1780 = vadd.s32 %v1776, 1
      %v1781 = vsel %vm1779, %v1780, %v1776
      %v1782 = vadd.s32 %v1777, %v1781
      %v1783 = vadd.s32 %v1782, 536870912
      %v1784 = vshrl.u32 %v1783, 30
      %v1785 = vshll.u32 %v1784, 30
      %v1786 = vsub.s32 %v1782, %v1785
      %vm1787 = vcmp.lt.s32.totalorder %v1786, 0
      %v1788 = vsub.s32 0, %v1786
      %v1789 = vsel %vm1787, %v1788, %v1786
      %v1790 = vclz %v1789
      %v1791 = vsub.s32 %v1790, 2
      %vm1792 = vcmp.gt.s32.totalorder 0, %v1791
      %v1793 = vsel %vm1792, 0, %v1791
      %v1794 = vsub.s32 32, %v1793
      %v1795 = vshll.u32 %v1786, %v1793
      %v1796 = vshrl.u32 %v1778, %v1794
      %v1797 = vor.u32 %v1795, %v1796
      %v1798 = vsub.s32 4294967266, %v1793
      %v1799 = vadd.s32 %v1798, 127
      %v1800 = vshll.u32 %v1799, 23
      %v1801 = vor.u32 4788187, %v1800
      %v1802 = vand.u32 2147483647, %v1801
      %v1804 = vcvt.s32.f32 %v1797
      %v1805 = vmul.f32 %v1804, %v1802
      %v1806 = vxor.u32 %v1805, 2147483648
      %v1807 = vsel %vm1724, %v1806, %v1805
      %v1808 = vsub.s32 4, %v1784
      %v1809 = vsel %vm1724, %v1808, %v1784
      %v1810 = vsel %vm1723, %v1616, %v1807
      %v1811 = vsel %vm1723, 0, %v1809
      %v1812 = vcosq.f32.pop %v1810
      %v1813 = vsinq.f32.pop %v1810
      %vm1814 = vweird.f32 %v1616
      %v1815 = vand.u32 %v1811, 3
      %vm1816 = vcmp.lt.s32.totalorder %v1815, 2
      %vm1817 = vcmp.eq.s32.totalorder %v1815, 0
      %v1818 = vxor.u32 %v1813, 2147483648
      %v1819 = vsel %vm1817, %v1812, %v1818
      %vm1820 = vcmp.eq.s32.totalorder %v1815, 2
      %v1821 = vxor.u32 %v1812, 2147483648
      %v1822 = vsel %vm1820, %v1821, %v1813
      %v1823 = vsel %vm1816, %v1819, %v1822
      %v1824 = vsel %vm1814, nan, %v1823
      %v1825 = vand.u32 2147483647, %v1611
      %vm1826 = vcmp.le.f32.partialorder %v1825, 0.7853982
      %vm1827 = vcmp.lt.s32.totalorder %v1611, 0
      %v1828 = vand.u32 %v1611, 2139095040
      %v1829 = vshrl.u32 %v1828, 23
      %v1830 = vsub.s32 %v1829, 127
      %v1831 = vand.u32 2147483647, %v1611
      %v1832 = vand.u32 %v1831, 8388607
      %v1833 = vor.u32 %v1832, 8388608
      %v1834 = vsub.s32 0, %v1833
      %v1835 = vadd.s32 %v1830, 1
      %vm1836 = vcmp.gt.s32.totalorder %v1835, 0
      %v1837 = vsel %vm1836, %v1835, 0
      %v1838 = vshrl.u32 %v1837, 5
      %v1839 = vand.u32 %v1837, 31
      %v1840 = vsub.s32 32, %v1839
      %v1841 = vshrl.u32 683565275, %v1840
      %v1842 = vshll.u32 683565275, %v1839
      %v1843 = vshrl.u32 2475754826, %v1840
      %v1844 = vor.u32 %v1842, %v1843
      %v1845 = vshll.u32 2475754826, %v1839
      %v1846 = vshrl.u32 2131351028, %v1840
      %v1847 = vor.u32 %v1845, %v1846
      %v1848 = vshll.u32 2131351028, %v1839
      %v1849 = vshrl.u32 2102212464, %v1840
      %v1850 = vor.u32 %v1848, %v1849
      %v1851 = vshll.u32 2102212464, %v1839
      %v1852 = vshrl.u32 920167782, %v1840
      %v1853 = vor.u32 %v1851, %v1852
      %v1854 = vshll.u32 920167782, %v1839
      %v1855 = vshrl.u32 1326507024, %v1840
      %v1856 = vor.u32 %v1854, %v1855
      %vm1857 = vcmp.lt.s32.totalorder %v1838, 1
      %vm1858 = vcmp.lt.s32.totalorder %v1838, 2
      %vm1859 = vcmp.lt.s32.totalorder %v1838, 3
      %vm1860 = vcmp.lt.s32.totalorder %v1838, 4
      %v1861 = vsel %vm1857, %v1841, %v1844
      %v1862 = vsel %vm1860, %v1850, 2102212464
      %v1863 = vsel %vm1859, %v1847, %v1862
      %v1864 = vsel %vm1858, %v1861, %v1863
      %v1865 = vsel %vm1857, %v1844, %v1847
      %v1866 = vsel %vm1860, %v1853, 920167782
      %v1867 = vsel %vm1859, %v1850, %v1866
      %v1868 = vsel %vm1858, %v1865, %v1867
      %v1869 = vsel %vm1857, %v1847, %v1850
      %v1870 = vsel %vm1860, %v1856, 1326507024
      %v1871 = vsel %vm1859, %v1853, %v1870
      %v1872 = vsel %vm1858, %v1869, %v1871
      %v1873 = vshll.u32 %v1833, 8
      %v1874 = vmul.u32.u64.compose %v1873, %v1872
      %v1875 = vextract.low.u32 %v1874
      %v1876 = vextract.high.u32 %v1874
      %v1877 = vmul.u32.u64.compose %v1873, %v1868
      %v1878 = vextract.low.u32 %v1877
      %v1879 = vextract.high.u32 %v1877
      %v1880 = vmul.u32 %v1873, %v1864
      %v1881 = vadd.s32 %v1876, %v1878
      %vm1882 = vc.u32 %v1876, %v1878
      %v1883 = vadd.s32 %v1879, 1
      %v1884 = vsel %vm1882, %v1883, %v1879
      %v1885 = vadd.s32 %v1880, %v1884
      %v1886 = vadd.s32 %v1885, 536870912
      %v1887 = vshrl.u32 %v1886, 30
      %v1888 = vshll.u32 %v1887, 30
      %v1889 = vsub.s32 %v1885, %v1888
      %vm1890 = vcmp.lt.s32.totalorder %v1889, 0
      %v1891 = vsub.s32 0, %v1889
      %v1892 = vsel %vm1890, %v1891, %v1889
      %v1893 = vclz %v1892
      %v1894 = vsub.s32 %v1893, 2
      %vm1895 = vcmp.gt.s32.totalorder 0, %v1894
      %v1896 = vsel %vm1895, 0, %v1894
      %v1897 = vsub.s32 32, %v1896
      %v1898 = vshll.u32 %v1889, %v1896
      %v1899 = vshrl.u32 %v1881, %v1897
      %v1900 = vor.u32 %v1898, %v1899
      %v1901 = vsub.s32 4294967266, %v1896
      %v1902 = vadd.s32 %v1901, 127
      %v1903 = vshll.u32 %v1902, 23
      %v1904 = vor.u32 4788187, %v1903
      %v1905 = vand.u32 2147483647, %v1904
      %v1907 = vcvt.s32.f32 %v1900
      %v1908 = vmul.f32 %v1907, %v1905
      %v1909 = vxor.u32 %v1908, 2147483648
      %v1910 = vsel %vm1827, %v1909, %v1908
      %v1911 = vsub.s32 4, %v1887
      %v1912 = vsel %vm1827, %v1911, %v1887
      %v1913 = vsel %vm1826, %v1611, %v1910
      %v1914 = vsel %vm1826, 0, %v1912
      %v1915 = vcosq.f32.pop %v1913
      %v1916 = vsinq.f32.pop %v1913
      %vm1917 = vweird.f32 %v1611
      %v1918 = vadd.s32 %v1914, 3
      %v1919 = vand.u32 %v1918, 3
      %vm1920 = vcmp.lt.s32.totalorder %v1919, 2
      %vm1921 = vcmp.eq.s32.totalorder %v1919, 0
      %v1922 = vxor.u32 %v1916, 2147483648
      %v1923 = vsel %vm1921, %v1915, %v1922
      %vm1924 = vcmp.eq.s32.totalorder %v1919, 2
      %v1925 = vxor.u32 %v1915, 2147483648
      %v1926 = vsel %vm1924, %v1925, %v1916
      %v1927 = vsel %vm1920, %v1923, %v1926
      %v1928 = vsel %vm1917, nan, %v1927
      %v1929 = vand.u32 2147483647, %v1616
      %vm1930 = vcmp.le.f32.partialorder %v1929, 0.7853982
      %vm1931 = vcmp.lt.s32.totalorder %v1616, 0
      %v1932 = vand.u32 %v1616, 2139095040
      %v1933 = vshrl.u32 %v1932, 23
      %v1934 = vsub.s32 %v1933, 127
      %v1935 = vand.u32 2147483647, %v1616
      %v1936 = vand.u32 %v1935, 8388607
      %v1937 = vor.u32 %v1936, 8388608
      %v1938 = vsub.s32 0, %v1937
      %v1939 = vadd.s32 %v1934, 1
      %vm1940 = vcmp.gt.s32.totalorder %v1939, 0
      %v1941 = vsel %vm1940, %v1939, 0
      %v1942 = vshrl.u32 %v1941, 5
      %v1943 = vand.u32 %v1941, 31
      %v1944 = vsub.s32 32, %v1943
      %v1945 = vshrl.u32 683565275, %v1944
      %v1946 = vshll.u32 683565275, %v1943
      %v1947 = vshrl.u32 2475754826, %v1944
      %v1948 = vor.u32 %v1946, %v1947
      %v1949 = vshll.u32 2475754826, %v1943
      %v1950 = vshrl.u32 2131351028, %v1944
      %v1951 = vor.u32 %v1949, %v1950
      %v1952 = vshll.u32 2131351028, %v1943
      %v1953 = vshrl.u32 2102212464, %v1944
      %v1954 = vor.u32 %v1952, %v1953
      %v1955 = vshll.u32 2102212464, %v1943
      %v1956 = vshrl.u32 920167782, %v1944
      %v1957 = vor.u32 %v1955, %v1956
      %v1958 = vshll.u32 920167782, %v1943
      %v1959 = vshrl.u32 1326507024, %v1944
      %v1960 = vor.u32 %v1958, %v1959
      %vm1961 = vcmp.lt.s32.totalorder %v1942, 1
      %vm1962 = vcmp.lt.s32.totalorder %v1942, 2
      %vm1963 = vcmp.lt.s32.totalorder %v1942, 3
      %vm1964 = vcmp.lt.s32.totalorder %v1942, 4
      %v1965 = vsel %vm1961, %v1945, %v1948
      %v1966 = vsel %vm1964, %v1954, 2102212464
      %v1967 = vsel %vm1963, %v1951, %v1966
      %v1968 = vsel %vm1962, %v1965, %v1967
      %v1969 = vsel %vm1961, %v1948, %v1951
      %v1970 = vsel %vm1964, %v1957, 920167782
      %v1971 = vsel %vm1963, %v1954, %v1970
      %v1972 = vsel %vm1962, %v1969, %v1971
      %v1973 = vsel %vm1961, %v1951, %v1954
      %v1974 = vsel %vm1964, %v1960, 1326507024
      %v1975 = vsel %vm1963, %v1957, %v1974
      %v1976 = vsel %vm1962, %v1973, %v1975
      %v1977 = vshll.u32 %v1937, 8
      %v1978 = vmul.u32.u64.compose %v1977, %v1976
      %v1979 = vextract.low.u32 %v1978
      %v1980 = vextract.high.u32 %v1978
      %v1981 = vmul.u32.u64.compose %v1977, %v1972
      %v1982 = vextract.low.u32 %v1981
      %v1983 = vextract.high.u32 %v1981
      %v1984 = vmul.u32 %v1977, %v1968
      %v1985 = vadd.s32 %v1980, %v1982
      %vm1986 = vc.u32 %v1980, %v1982
      %v1987 = vadd.s32 %v1983, 1
      %v1988 = vsel %vm1986, %v1987, %v1983
      %v1989 = vadd.s32 %v1984, %v1988
      %v1990 = vadd.s32 %v1989, 536870912
      %v1991 = vshrl.u32 %v1990, 30
      %v1992 = vshll.u32 %v1991, 30
      %v1993 = vsub.s32 %v1989, %v1992
      %vm1994 = vcmp.lt.s32.totalorder %v1993, 0
      %v1995 = vsub.s32 0, %v1993
      %v1996 = vsel %vm1994, %v1995, %v1993
      %v1997 = vclz %v1996
      %v1998 = vsub.s32 %v1997, 2
      %vm1999 = vcmp.gt.s32.totalorder 0, %v1998
      %v2000 = vsel %vm1999, 0, %v1998
      %v2001 = vsub.s32 32, %v2000
      %v2002 = vshll.u32 %v1993, %v2000
      %v2003 = vshrl.u32 %v1985, %v2001
      %v2004 = vor.u32 %v2002, %v2003
      %v2005 = vsub.s32 4294967266, %v2000
      %v2006 = vadd.s32 %v2005, 127
      %v2007 = vshll.u32 %v2006, 23
      %v2008 = vor.u32 4788187, %v2007
      %v2009 = vand.u32 2147483647, %v2008
      %v2011 = vcvt.s32.f32 %v2004
      %v2012 = vmul.f32 %v2011, %v2009
      %v2013 = vxor.u32 %v2012, 2147483648
      %v2014 = vsel %vm1931, %v2013, %v2012
      %v2015 = vsub.s32 4, %v1991
      %v2016 = vsel %vm1931, %v2015, %v1991
      %v2017 = vsel %vm1930, %v1616, %v2014
      %v2018 = vsel %vm1930, 0, %v2016
      %v2019 = vcosq.f32.pop %v2017
      %v2020 = vsinq.f32.pop %v2017
      %vm2021 = vweird.f32 %v1616
      %v2022 = vadd.s32 %v2018, 3
      %v2023 = vand.u32 %v2022, 3
      %vm2024 = vcmp.lt.s32.totalorder %v2023, 2
      %vm2025 = vcmp.eq.s32.totalorder %v2023, 0
      %v2026 = vxor.u32 %v2020, 2147483648
      %v2027 = vsel %vm2025, %v2019, %v2026
      %vm2028 = vcmp.eq.s32.totalorder %v2023, 2
      %v2029 = vxor.u32 %v2019, 2147483648
      %v2030 = vsel %vm2028, %v2029, %v2020
      %v2031 = vsel %vm2024, %v2027, %v2030
      %v2032 = vsel %vm2021, nan, %v2031
      %s2033 = scalar_lea.vmem %s402, 32
      %v2034 = vld [vmem:[%s2033] sm:$0xff]
      %v2035 = vld [vmem:[%s2033 + $0x8] sm:$0xff]
      %2036 = vrot.lane.b32.xlu0 %v2034, 127
      %v2037 = vpop.permute.xlu0 %2036
      %2038 = vrot.lane.b32.xlu0 %v2035, 127
      %v2039 = vpop.permute.xlu0 %2038
      %2040 = vrot.lane.b32.xlu0 %v2034, 1
      %v2041 = vpop.permute.xlu0 %2040
      %2042 = vrot.lane.b32.xlu0 %v2035, 1
      %v2043 = vpop.permute.xlu0 %2042
      %v2044 = vsel %vm469, %v2037, %v2041
      %v2045 = vsel %vm469, %v2039, %v2043
      %v2046 = vmul.f32 %v2034, %v1721
      %v2047 = vmul.f32 %v2035, %v1824
      %v2048 = vmul.f32 %v2044, %v1928
      %v2049 = vmul.f32 %v2045, %v2032
      %v2050 = vadd.f32 %v2046, %v2048
      %v2051 = vadd.f32 %v2047, %v2049
      %s2052 = scalar_lea.vmem %s434, 32
      %2053 = vst [vmem:[%s2052] sm:$0xff] %v2050
      %2054 = vst [vmem:[%s2052 + $0x8] sm:$0xff] %v2051
      %s2055 = scalar_lea.vmem %s418, 32
      %v2056 = vld [vmem:[%s2055] sm:$0xff]
      %v2057 = vld [vmem:[%s2055 + $0x8] sm:$0xff]
      %2058 = vrot.lane.b32.xlu0 %v2056, 127
      %v2059 = vpop.permute.xlu0 %2058
      %2060 = vrot.lane.b32.xlu0 %v2057, 127
      %v2061 = vpop.permute.xlu0 %2060
      %2062 = vrot.lane.b32.xlu0 %v2056, 1
      %v2063 = vpop.permute.xlu0 %2062
      %2064 = vrot.lane.b32.xlu0 %v2057, 1
      %v2065 = vpop.permute.xlu0 %2064
      %v2066 = vsel %vm469, %v2059, %v2063
      %v2067 = vsel %vm469, %v2061, %v2065
      %v2068 = vmul.f32 %v2056, %v1721
      %v2069 = vmul.f32 %v2057, %v1824
      %v2070 = vmul.f32 %v2066, %v1928
      %v2071 = vmul.f32 %v2067, %v2032
      %v2072 = vadd.f32 %v2068, %v2070
      %v2073 = vadd.f32 %v2069, %v2071
      %s2074 = scalar_lea.vmem %s450, 32
      %2075 = vst [vmem:[%s2074] sm:$0xff] %v2072
      %2076 = vst [vmem:[%s2074 + $0x8] sm:$0xff] %v2073
      %s2077 = scalar_lea.vmem %s387, 24
      %v2078 = vld [vmem:[%s2077] sm:$0xff]
      %2079 = vmatprep.subr.mxu0 0.0
      %2080 = vmatpush1.msra.mxu0 0.0
      %2081 = vmatprep.subr.mxu0 0.0
      %2082 = vmatpush1.msra.mxu0 0.0
      %2083 = vmatprep.subr.mxu0 0.0
      %2084 = vmatpush1.msra.mxu0 0.0
      %2085 = vmatprep.subr.mxu0 0.0
      %2086 = vmatpush1.msra.mxu0 0.0
      %2087 = vmatprep.subr.mxu0 0.0
      %2088 = vmatpush1.msra.mxu0 0.0
      %2089 = vmatprep.subr.mxu0 0.0
      %2090 = vmatpush1.msra.mxu0 0.0
      %2091 = vmatprep.subr.mxu0 0.0
      %2092 = vmatpush1.msra.mxu0 0.0
      %2093 = vmatprep.subr.mxu0 0.0
      %2094 = vmatpush1.msra.mxu0 0.0
      %2095 = vmatprep.subr.mxu0 0.0
      %2096 = vmatpush1.msra.mxu0 0.0
      %2097 = vmatprep.subr.mxu0 0.0
      %2098 = vmatpush1.msra.mxu0 0.0
      %2099 = vmatprep.subr.mxu0 0.0
      %2100 = vmatpush1.msra.mxu0 0.0
      %2101 = vmatprep.subr.mxu0 0.0
      %2102 = vmatpush1.msra.mxu0 0.0
      %2103 = vmatprep.subr.mxu0 0.0
      %2104 = vmatpush1.msra.mxu0 0.0
      %2105 = vmatprep.subr.mxu0 0.0
      %2106 = vmatpush1.msra.mxu0 0.0
      %2107 = vmatprep.subr.mxu0 0.0
      %2108 = vmatpush1.msra.mxu0 0.0
      %2109 = vmatprep.subr.mxu0 0.0
      %2110 = vmatpush1.msra.mxu0 %v2078
      %2111 = vmatprep.subr.mxu0 0.0
      %2112 = vmatpush2.msra.mxu0 0.0
      %2113 = vmatprep.subr.mxu0 0.0
      %2114 = vmatpush2.msra.mxu0 0.0
      %2115 = vmatprep.subr.mxu0 0.0
      %2116 = vmatpush2.msra.mxu0 0.0
      %2117 = vmatprep.subr.mxu0 0.0
      %2118 = vmatpush2.msra.mxu0 0.0
      %2119 = vmatprep.subr.mxu0 0.0
      %2120 = vmatpush2.msra.mxu0 0.0
      %2121 = vmatprep.subr.mxu0 0.0
      %2122 = vmatpush2.msra.mxu0 0.0
      %2123 = vmatprep.subr.mxu0 0.0
      %2124 = vmatpush2.msra.mxu0 0.0
      %2125 = vmatprep.subr.mxu0 0.0
      %2126 = vmatpush2.msra.mxu0 0.0
      %2127 = vmatprep.subr.mxu0 0.0
      %2128 = vmatpush2.msra.mxu0 0.0
      %2129 = vmatprep.subr.mxu0 0.0
      %2130 = vmatpush2.msra.mxu0 0.0
      %2131 = vmatprep.subr.mxu0 0.0
      %2132 = vmatpush2.msra.mxu0 0.0
      %2133 = vmatprep.subr.mxu0 0.0
      %2134 = vmatpush2.msra.mxu0 0.0
      %2135 = vmatprep.subr.mxu0 0.0
      %2136 = vmatpush2.msra.mxu0 0.0
      %2137 = vmatprep.subr.mxu0 0.0
      %2138 = vmatpush2.msra.mxu0 0.0
      %2139 = vmatprep.subr.mxu0 0.0
      %2140 = vmatpush2.msra.mxu0 0.0
      %2141 = vmatprep.subr.mxu0 0.0
      %2142 = vmatpush2.msra.mxu0 0.0
      %2143 = vmatprep.mubr.f32.mxu0 0.0
      %2144 = vmatmul.mubr.f32.gmra.mxu0 %v473
      %v2145 = vpop.f32.mrf.mxu0
      %v2146 = vadd.f32 0.0, %v2145
      %v2147 = vpop.f32.mrf.mxu0
      %2148 = vmatprep.mubr.f32.mxu0 0.0
      %2149 = vmatmul.mubr.f32.gmra.mxu0 %v476
      %v2150 = vpop.f32.mrf.mxu0
      %v2151 = vadd.f32 0.0, %v2150
      %v2152 = vpop.f32.mrf.mxu0
      %2153 = vdwg.mxu0
      %v2154 = vand.u32 2147483647, %v2146
      %vm2155 = vcmp.le.f32.partialorder %v2154, 0.7853982
      %vm2156 = vcmp.lt.s32.totalorder %v2146, 0
      %v2157 = vand.u32 %v2146, 2139095040
      %v2158 = vshrl.u32 %v2157, 23
      %v2159 = vsub.s32 %v2158, 127
      %v2160 = vand.u32 2147483647, %v2146
      %v2161 = vand.u32 %v2160, 8388607
      %v2162 = vor.u32 %v2161, 8388608
      %v2163 = vsub.s32 0, %v2162
      %v2164 = vadd.s32 %v2159, 1
      %vm2165 = vcmp.gt.s32.totalorder %v2164, 0
      %v2166 = vsel %vm2165, %v2164, 0
      %v2167 = vshrl.u32 %v2166, 5
      %v2168 = vand.u32 %v2166, 31
      %v2169 = vsub.s32 32, %v2168
      %v2170 = vshrl.u32 683565275, %v2169
      %v2171 = vshll.u32 683565275, %v2168
      %v2172 = vshrl.u32 2475754826, %v2169
      %v2173 = vor.u32 %v2171, %v2172
      %v2174 = vshll.u32 2475754826, %v2168
      %v2175 = vshrl.u32 2131351028, %v2169
      %v2176 = vor.u32 %v2174, %v2175
      %v2177 = vshll.u32 2131351028, %v2168
      %v2178 = vshrl.u32 2102212464, %v2169
      %v2179 = vor.u32 %v2177, %v2178
      %v2180 = vshll.u32 2102212464, %v2168
      %v2181 = vshrl.u32 920167782, %v2169
      %v2182 = vor.u32 %v2180, %v2181
      %v2183 = vshll.u32 920167782, %v2168
      %v2184 = vshrl.u32 1326507024, %v2169
      %v2185 = vor.u32 %v2183, %v2184
      %vm2186 = vcmp.lt.s32.totalorder %v2167, 1
      %vm2187 = vcmp.lt.s32.totalorder %v2167, 2
      %vm2188 = vcmp.lt.s32.totalorder %v2167, 3
      %vm2189 = vcmp.lt.s32.totalorder %v2167, 4
      %v2190 = vsel %vm2186, %v2170, %v2173
      %v2191 = vsel %vm2189, %v2179, 2102212464
      %v2192 = vsel %vm2188, %v2176, %v2191
      %v2193 = vsel %vm2187, %v2190, %v2192
      %v2194 = vsel %vm2186, %v2173, %v2176
      %v2195 = vsel %vm2189, %v2182, 920167782
      %v2196 = vsel %vm2188, %v2179, %v2195
      %v2197 = vsel %vm2187, %v2194, %v2196
      %v2198 = vsel %vm2186, %v2176, %v2179
      %v2199 = vsel %vm2189, %v2185, 1326507024
      %v2200 = vsel %vm2188, %v2182, %v2199
      %v2201 = vsel %vm2187, %v2198, %v2200
      %v2202 = vshll.u32 %v2162, 8
      %v2203 = vmul.u32.u64.compose %v2202, %v2201
      %v2204 = vextract.low.u32 %v2203
      %v2205 = vextract.high.u32 %v2203
      %v2206 = vmul.u32.u64.compose %v2202, %v2197
      %v2207 = vextract.low.u32 %v2206
      %v2208 = vextract.high.u32 %v2206
      %v2209 = vmul.u32 %v2202, %v2193
      %v2210 = vadd.s32 %v2205, %v2207
      %vm2211 = vc.u32 %v2205, %v2207
      %v2212 = vadd.s32 %v2208, 1
      %v2213 = vsel %vm2211, %v2212, %v2208
      %v2214 = vadd.s32 %v2209, %v2213
      %v2215 = vadd.s32 %v2214, 536870912
      %v2216 = vshrl.u32 %v2215, 30
      %v2217 = vshll.u32 %v2216, 30
      %v2218 = vsub.s32 %v2214, %v2217
      %vm2219 = vcmp.lt.s32.totalorder %v2218, 0
      %v2220 = vsub.s32 0, %v2218
      %v2221 = vsel %vm2219, %v2220, %v2218
      %v2222 = vclz %v2221
      %v2223 = vsub.s32 %v2222, 2
      %vm2224 = vcmp.gt.s32.totalorder 0, %v2223
      %v2225 = vsel %vm2224, 0, %v2223
      %v2226 = vsub.s32 32, %v2225
      %v2227 = vshll.u32 %v2218, %v2225
      %v2228 = vshrl.u32 %v2210, %v2226
      %v2229 = vor.u32 %v2227, %v2228
      %v2230 = vsub.s32 4294967266, %v2225
      %v2231 = vadd.s32 %v2230, 127
      %v2232 = vshll.u32 %v2231, 23
      %v2233 = vor.u32 4788187, %v2232
      %v2234 = vand.u32 2147483647, %v2233
      %v2236 = vcvt.s32.f32 %v2229
      %v2237 = vmul.f32 %v2236, %v2234
      %v2238 = vxor.u32 %v2237, 2147483648
      %v2239 = vsel %vm2156, %v2238, %v2237
      %v2240 = vsub.s32 4, %v2216
      %v2241 = vsel %vm2156, %v2240, %v2216
      %v2242 = vsel %vm2155, %v2146, %v2239
      %v2243 = vsel %vm2155, 0, %v2241
      %v2244 = vcosq.f32.pop %v2242
      %v2245 = vsinq.f32.pop %v2242
      %vm2246 = vweird.f32 %v2146
      %v2247 = vand.u32 %v2243, 3
      %vm2248 = vcmp.lt.s32.totalorder %v2247, 2
      %vm2249 = vcmp.eq.s32.totalorder %v2247, 0
      %v2250 = vxor.u32 %v2245, 2147483648
      %v2251 = vsel %vm2249, %v2244, %v2250
      %vm2252 = vcmp.eq.s32.totalorder %v2247, 2
      %v2253 = vxor.u32 %v2244, 2147483648
      %v2254 = vsel %vm2252, %v2253, %v2245
      %v2255 = vsel %vm2248, %v2251, %v2254
      %v2256 = vsel %vm2246, nan, %v2255
      %v2257 = vand.u32 2147483647, %v2151
      %vm2258 = vcmp.le.f32.partialorder %v2257, 0.7853982
      %vm2259 = vcmp.lt.s32.totalorder %v2151, 0
      %v2260 = vand.u32 %v2151, 2139095040
      %v2261 = vshrl.u32 %v2260, 23
      %v2262 = vsub.s32 %v2261, 127
      %v2263 = vand.u32 2147483647, %v2151
      %v2264 = vand.u32 %v2263, 8388607
      %v2265 = vor.u32 %v2264, 8388608
      %v2266 = vsub.s32 0, %v2265
      %v2267 = vadd.s32 %v2262, 1
      %vm2268 = vcmp.gt.s32.totalorder %v2267, 0
      %v2269 = vsel %vm2268, %v2267, 0
      %v2270 = vshrl.u32 %v2269, 5
      %v2271 = vand.u32 %v2269, 31
      %v2272 = vsub.s32 32, %v2271
      %v2273 = vshrl.u32 683565275, %v2272
      %v2274 = vshll.u32 683565275, %v2271
      %v2275 = vshrl.u32 2475754826, %v2272
      %v2276 = vor.u32 %v2274, %v2275
      %v2277 = vshll.u32 2475754826, %v2271
      %v2278 = vshrl.u32 2131351028, %v2272
      %v2279 = vor.u32 %v2277, %v2278
      %v2280 = vshll.u32 2131351028, %v2271
      %v2281 = vshrl.u32 2102212464, %v2272
      %v2282 = vor.u32 %v2280, %v2281
      %v2283 = vshll.u32 2102212464, %v2271
      %v2284 = vshrl.u32 920167782, %v2272
      %v2285 = vor.u32 %v2283, %v2284
      %v2286 = vshll.u32 920167782, %v2271
      %v2287 = vshrl.u32 1326507024, %v2272
      %v2288 = vor.u32 %v2286, %v2287
      %vm2289 = vcmp.lt.s32.totalorder %v2270, 1
      %vm2290 = vcmp.lt.s32.totalorder %v2270, 2
      %vm2291 = vcmp.lt.s32.totalorder %v2270, 3
      %vm2292 = vcmp.lt.s32.totalorder %v2270, 4
      %v2293 = vsel %vm2289, %v2273, %v2276
      %v2294 = vsel %vm2292, %v2282, 2102212464
      %v2295 = vsel %vm2291, %v2279, %v2294
      %v2296 = vsel %vm2290, %v2293, %v2295
      %v2297 = vsel %vm2289, %v2276, %v2279
      %v2298 = vsel %vm2292, %v2285, 920167782
      %v2299 = vsel %vm2291, %v2282, %v2298
      %v2300 = vsel %vm2290, %v2297, %v2299
      %v2301 = vsel %vm2289, %v2279, %v2282
      %v2302 = vsel %vm2292, %v2288, 1326507024
      %v2303 = vsel %vm2291, %v2285, %v2302
      %v2304 = vsel %vm2290, %v2301, %v2303
      %v2305 = vshll.u32 %v2265, 8
      %v2306 = vmul.u32.u64.compose %v2305, %v2304
      %v2307 = vextract.low.u32 %v2306
      %v2308 = vextract.high.u32 %v2306
      %v2309 = vmul.u32.u64.compose %v2305, %v2300
      %v2310 = vextract.low.u32 %v2309
      %v2311 = vextract.high.u32 %v2309
      %v2312 = vmul.u32 %v2305, %v2296
      %v2313 = vadd.s32 %v2308, %v2310
      %vm2314 = vc.u32 %v2308, %v2310
      %v2315 = vadd.s32 %v2311, 1
      %v2316 = vsel %vm2314, %v2315, %v2311
      %v2317 = vadd.s32 %v2312, %v2316
      %v2318 = vadd.s32 %v2317, 536870912
      %v2319 = vshrl.u32 %v2318, 30
      %v2320 = vshll.u32 %v2319, 30
      %v2321 = vsub.s32 %v2317, %v2320
      %vm2322 = vcmp.lt.s32.totalorder %v2321, 0
      %v2323 = vsub.s32 0, %v2321
      %v2324 = vsel %vm2322, %v2323, %v2321
      %v2325 = vclz %v2324
      %v2326 = vsub.s32 %v2325, 2
      %vm2327 = vcmp.gt.s32.totalorder 0, %v2326
      %v2328 = vsel %vm2327, 0, %v2326
      %v2329 = vsub.s32 32, %v2328
      %v2330 = vshll.u32 %v2321, %v2328
      %v2331 = vshrl.u32 %v2313, %v2329
      %v2332 = vor.u32 %v2330, %v2331
      %v2333 = vsub.s32 4294967266, %v2328
      %v2334 = vadd.s32 %v2333, 127
      %v2335 = vshll.u32 %v2334, 23
      %v2336 = vor.u32 4788187, %v2335
      %v2337 = vand.u32 2147483647, %v2336
      %v2339 = vcvt.s32.f32 %v2332
      %v2340 = vmul.f32 %v2339, %v2337
      %v2341 = vxor.u32 %v2340, 2147483648
      %v2342 = vsel %vm2259, %v2341, %v2340
      %v2343 = vsub.s32 4, %v2319
      %v2344 = vsel %vm2259, %v2343, %v2319
      %v2345 = vsel %vm2258, %v2151, %v2342
      %v2346 = vsel %vm2258, 0, %v2344
      %v2347 = vcosq.f32.pop %v2345
      %v2348 = vsinq.f32.pop %v2345
      %vm2349 = vweird.f32 %v2151
      %v2350 = vand.u32 %v2346, 3
      %vm2351 = vcmp.lt.s32.totalorder %v2350, 2
      %vm2352 = vcmp.eq.s32.totalorder %v2350, 0
      %v2353 = vxor.u32 %v2348, 2147483648
      %v2354 = vsel %vm2352, %v2347, %v2353
      %vm2355 = vcmp.eq.s32.totalorder %v2350, 2
      %v2356 = vxor.u32 %v2347, 2147483648
      %v2357 = vsel %vm2355, %v2356, %v2348
      %v2358 = vsel %vm2351, %v2354, %v2357
      %v2359 = vsel %vm2349, nan, %v2358
      %v2360 = vand.u32 2147483647, %v2146
      %vm2361 = vcmp.le.f32.partialorder %v2360, 0.7853982
      %vm2362 = vcmp.lt.s32.totalorder %v2146, 0
      %v2363 = vand.u32 %v2146, 2139095040
      %v2364 = vshrl.u32 %v2363, 23
      %v2365 = vsub.s32 %v2364, 127
      %v2366 = vand.u32 2147483647, %v2146
      %v2367 = vand.u32 %v2366, 8388607
      %v2368 = vor.u32 %v2367, 8388608
      %v2369 = vsub.s32 0, %v2368
      %v2370 = vadd.s32 %v2365, 1
      %vm2371 = vcmp.gt.s32.totalorder %v2370, 0
      %v2372 = vsel %vm2371, %v2370, 0
      %v2373 = vshrl.u32 %v2372, 5
      %v2374 = vand.u32 %v2372, 31
      %v2375 = vsub.s32 32, %v2374
      %v2376 = vshrl.u32 683565275, %v2375
      %v2377 = vshll.u32 683565275, %v2374
      %v2378 = vshrl.u32 2475754826, %v2375
      %v2379 = vor.u32 %v2377, %v2378
      %v2380 = vshll.u32 2475754826, %v2374
      %v2381 = vshrl.u32 2131351028, %v2375
      %v2382 = vor.u32 %v2380, %v2381
      %v2383 = vshll.u32 2131351028, %v2374
      %v2384 = vshrl.u32 2102212464, %v2375
      %v2385 = vor.u32 %v2383, %v2384
      %v2386 = vshll.u32 2102212464, %v2374
      %v2387 = vshrl.u32 920167782, %v2375
      %v2388 = vor.u32 %v2386, %v2387
      %v2389 = vshll.u32 920167782, %v2374
      %v2390 = vshrl.u32 1326507024, %v2375
      %v2391 = vor.u32 %v2389, %v2390
      %vm2392 = vcmp.lt.s32.totalorder %v2373, 1
      %vm2393 = vcmp.lt.s32.totalorder %v2373, 2
      %vm2394 = vcmp.lt.s32.totalorder %v2373, 3
      %vm2395 = vcmp.lt.s32.totalorder %v2373, 4
      %v2396 = vsel %vm2392, %v2376, %v2379
      %v2397 = vsel %vm2395, %v2385, 2102212464
      %v2398 = vsel %vm2394, %v2382, %v2397
      %v2399 = vsel %vm2393, %v2396, %v2398
      %v2400 = vsel %vm2392, %v2379, %v2382
      %v2401 = vsel %vm2395, %v2388, 920167782
      %v2402 = vsel %vm2394, %v2385, %v2401
      %v2403 = vsel %vm2393, %v2400, %v2402
      %v2404 = vsel %vm2392, %v2382, %v2385
      %v2405 = vsel %vm2395, %v2391, 1326507024
      %v2406 = vsel %vm2394, %v2388, %v2405
      %v2407 = vsel %vm2393, %v2404, %v2406
      %v2408 = vshll.u32 %v2368, 8
      %v2409 = vmul.u32.u64.compose %v2408, %v2407
      %v2410 = vextract.low.u32 %v2409
      %v2411 = vextract.high.u32 %v2409
      %v2412 = vmul.u32.u64.compose %v2408, %v2403
      %v2413 = vextract.low.u32 %v2412
      %v2414 = vextract.high.u32 %v2412
      %v2415 = vmul.u32 %v2408, %v2399
      %v2416 = vadd.s32 %v2411, %v2413
      %vm2417 = vc.u32 %v2411, %v2413
      %v2418 = vadd.s32 %v2414, 1
      %v2419 = vsel %vm2417, %v2418, %v2414
      %v2420 = vadd.s32 %v2415, %v2419
      %v2421 = vadd.s32 %v2420, 536870912
      %v2422 = vshrl.u32 %v2421, 30
      %v2423 = vshll.u32 %v2422, 30
      %v2424 = vsub.s32 %v2420, %v2423
      %vm2425 = vcmp.lt.s32.totalorder %v2424, 0
      %v2426 = vsub.s32 0, %v2424
      %v2427 = vsel %vm2425, %v2426, %v2424
      %v2428 = vclz %v2427
      %v2429 = vsub.s32 %v2428, 2
      %vm2430 = vcmp.gt.s32.totalorder 0, %v2429
      %v2431 = vsel %vm2430, 0, %v2429
      %v2432 = vsub.s32 32, %v2431
      %v2433 = vshll.u32 %v2424, %v2431
      %v2434 = vshrl.u32 %v2416, %v2432
      %v2435 = vor.u32 %v2433, %v2434
      %v2436 = vsub.s32 4294967266, %v2431
      %v2437 = vadd.s32 %v2436, 127
      %v2438 = vshll.u32 %v2437, 23
      %v2439 = vor.u32 4788187, %v2438
      %v2440 = vand.u32 2147483647, %v2439
      %v2442 = vcvt.s32.f32 %v2435
      %v2443 = vmul.f32 %v2442, %v2440
      %v2444 = vxor.u32 %v2443, 2147483648
      %v2445 = vsel %vm2362, %v2444, %v2443
      %v2446 = vsub.s32 4, %v2422
      %v2447 = vsel %vm2362, %v2446, %v2422
      %v2448 = vsel %vm2361, %v2146, %v2445
      %v2449 = vsel %vm2361, 0, %v2447
      %v2450 = vcosq.f32.pop %v2448
      %v2451 = vsinq.f32.pop %v2448
      %vm2452 = vweird.f32 %v2146
      %v2453 = vadd.s32 %v2449, 3
      %v2454 = vand.u32 %v2453, 3
      %vm2455 = vcmp.lt.s32.totalorder %v2454, 2
      %vm2456 = vcmp.eq.s32.totalorder %v2454, 0
      %v2457 = vxor.u32 %v2451, 2147483648
      %v2458 = vsel %vm2456, %v2450, %v2457
      %vm2459 = vcmp.eq.s32.totalorder %v2454, 2
      %v2460 = vxor.u32 %v2450, 2147483648
      %v2461 = vsel %vm2459, %v2460, %v2451
      %v2462 = vsel %vm2455, %v2458, %v2461
      %v2463 = vsel %vm2452, nan, %v2462
      %v2464 = vand.u32 2147483647, %v2151
      %vm2465 = vcmp.le.f32.partialorder %v2464, 0.7853982
      %vm2466 = vcmp.lt.s32.totalorder %v2151, 0
      %v2467 = vand.u32 %v2151, 2139095040
      %v2468 = vshrl.u32 %v2467, 23
      %v2469 = vsub.s32 %v2468, 127
      %v2470 = vand.u32 2147483647, %v2151
      %v2471 = vand.u32 %v2470, 8388607
      %v2472 = vor.u32 %v2471, 8388608
      %v2473 = vsub.s32 0, %v2472
      %v2474 = vadd.s32 %v2469, 1
      %vm2475 = vcmp.gt.s32.totalorder %v2474, 0
      %v2476 = vsel %vm2475, %v2474, 0
      %v2477 = vshrl.u32 %v2476, 5
      %v2478 = vand.u32 %v2476, 31
      %v2479 = vsub.s32 32, %v2478
      %v2480 = vshrl.u32 683565275, %v2479
      %v2481 = vshll.u32 683565275, %v2478
      %v2482 = vshrl.u32 2475754826, %v2479
      %v2483 = vor.u32 %v2481, %v2482
      %v2484 = vshll.u32 2475754826, %v2478
      %v2485 = vshrl.u32 2131351028, %v2479
      %v2486 = vor.u32 %v2484, %v2485
      %v2487 = vshll.u32 2131351028, %v2478
      %v2488 = vshrl.u32 2102212464, %v2479
      %v2489 = vor.u32 %v2487, %v2488
      %v2490 = vshll.u32 2102212464, %v2478
      %v2491 = vshrl.u32 920167782, %v2479
      %v2492 = vor.u32 %v2490, %v2491
      %v2493 = vshll.u32 920167782, %v2478
      %v2494 = vshrl.u32 1326507024, %v2479
      %v2495 = vor.u32 %v2493, %v2494
      %vm2496 = vcmp.lt.s32.totalorder %v2477, 1
      %vm2497 = vcmp.lt.s32.totalorder %v2477, 2
      %vm2498 = vcmp.lt.s32.totalorder %v2477, 3
      %vm2499 = vcmp.lt.s32.totalorder %v2477, 4
      %v2500 = vsel %vm2496, %v2480, %v2483
      %v2501 = vsel %vm2499, %v2489, 2102212464
      %v2502 = vsel %vm2498, %v2486, %v2501
      %v2503 = vsel %vm2497, %v2500, %v2502
      %v2504 = vsel %vm2496, %v2483, %v2486
      %v2505 = vsel %vm2499, %v2492, 920167782
      %v2506 = vsel %vm2498, %v2489, %v2505
      %v2507 = vsel %vm2497, %v2504, %v2506
      %v2508 = vsel %vm2496, %v2486, %v2489
      %v2509 = vsel %vm2499, %v2495, 1326507024
      %v2510 = vsel %vm2498, %v2492, %v2509
      %v2511 = vsel %vm2497, %v2508, %v2510
      %v2512 = vshll.u32 %v2472, 8
      %v2513 = vmul.u32.u64.compose %v2512, %v2511
      %v2514 = vextract.low.u32 %v2513
      %v2515 = vextract.high.u32 %v2513
      %v2516 = vmul.u32.u64.compose %v2512, %v2507
      %v2517 = vextract.low.u32 %v2516
      %v2518 = vextract.high.u32 %v2516
      %v2519 = vmul.u32 %v2512, %v2503
      %v2520 = vadd.s32 %v2515, %v2517
      %vm2521 = vc.u32 %v2515, %v2517
      %v2522 = vadd.s32 %v2518, 1
      %v2523 = vsel %vm2521, %v2522, %v2518
      %v2524 = vadd.s32 %v2519, %v2523
      %v2525 = vadd.s32 %v2524, 536870912
      %v2526 = vshrl.u32 %v2525, 30
      %v2527 = vshll.u32 %v2526, 30
      %v2528 = vsub.s32 %v2524, %v2527
      %vm2529 = vcmp.lt.s32.totalorder %v2528, 0
      %v2530 = vsub.s32 0, %v2528
      %v2531 = vsel %vm2529, %v2530, %v2528
      %v2532 = vclz %v2531
      %v2533 = vsub.s32 %v2532, 2
      %vm2534 = vcmp.gt.s32.totalorder 0, %v2533
      %v2535 = vsel %vm2534, 0, %v2533
      %v2536 = vsub.s32 32, %v2535
      %v2537 = vshll.u32 %v2528, %v2535
      %v2538 = vshrl.u32 %v2520, %v2536
      %v2539 = vor.u32 %v2537, %v2538
      %v2540 = vsub.s32 4294967266, %v2535
      %v2541 = vadd.s32 %v2540, 127
      %v2542 = vshll.u32 %v2541, 23
      %v2543 = vor.u32 4788187, %v2542
      %v2544 = vand.u32 2147483647, %v2543
      %v2546 = vcvt.s32.f32 %v2539
      %v2547 = vmul.f32 %v2546, %v2544
      %v2548 = vxor.u32 %v2547, 2147483648
      %v2549 = vsel %vm2466, %v2548, %v2547
      %v2550 = vsub.s32 4, %v2526
      %v2551 = vsel %vm2466, %v2550, %v2526
      %v2552 = vsel %vm2465, %v2151, %v2549
      %v2553 = vsel %vm2465, 0, %v2551
      %v2554 = vcosq.f32.pop %v2552
      %v2555 = vsinq.f32.pop %v2552
      %vm2556 = vweird.f32 %v2151
      %v2557 = vadd.s32 %v2553, 3
      %v2558 = vand.u32 %v2557, 3
      %vm2559 = vcmp.lt.s32.totalorder %v2558, 2
      %vm2560 = vcmp.eq.s32.totalorder %v2558, 0
      %v2561 = vxor.u32 %v2555, 2147483648
      %v2562 = vsel %vm2560, %v2554, %v2561
      %vm2563 = vcmp.eq.s32.totalorder %v2558, 2
      %v2564 = vxor.u32 %v2554, 2147483648
      %v2565 = vsel %vm2563, %v2564, %v2555
      %v2566 = vsel %vm2559, %v2562, %v2565
      %v2567 = vsel %vm2556, nan, %v2566
      %s2568 = scalar_lea.vmem %s402, 48
      %v2569 = vld [vmem:[%s2568] sm:$0xff]
      %v2570 = vld [vmem:[%s2568 + $0x8] sm:$0xff]
      %2571 = vrot.lane.b32.xlu0 %v2569, 127
      %v2572 = vpop.permute.xlu0 %2571
      %2573 = vrot.lane.b32.xlu0 %v2570, 127
      %v2574 = vpop.permute.xlu0 %2573
      %2575 = vrot.lane.b32.xlu0 %v2569, 1
      %v2576 = vpop.permute.xlu0 %2575
      %2577 = vrot.lane.b32.xlu0 %v2570, 1
      %v2578 = vpop.permute.xlu0 %2577
      %v2579 = vsel %vm469, %v2572, %v2576
      %v2580 = vsel %vm469, %v2574, %v2578
      %v2581 = vmul.f32 %v2569, %v2256
      %v2582 = vmul.f32 %v2570, %v2359
      %v2583 = vmul.f32 %v2579, %v2463
      %v2584 = vmul.f32 %v2580, %v2567
      %v2585 = vadd.f32 %v2581, %v2583
      %v2586 = vadd.f32 %v2582, %v2584
      %s2587 = scalar_lea.vmem %s434, 48
      %2588 = vst [vmem:[%s2587] sm:$0xff] %v2585
      %2589 = vst [vmem:[%s2587 + $0x8] sm:$0xff] %v2586
      %s2590 = scalar_lea.vmem %s418, 48
      %v2591 = vld [vmem:[%s2590] sm:$0xff]
      %v2592 = vld [vmem:[%s2590 + $0x8] sm:$0xff]
      %2593 = vrot.lane.b32.xlu0 %v2591, 127
      %v2594 = vpop.permute.xlu0 %2593
      %2595 = vrot.lane.b32.xlu0 %v2592, 127
      %v2596 = vpop.permute.xlu0 %2595
      %2597 = vrot.lane.b32.xlu0 %v2591, 1
      %v2598 = vpop.permute.xlu0 %2597
      %2599 = vrot.lane.b32.xlu0 %v2592, 1
      %v2600 = vpop.permute.xlu0 %2599
      %v2601 = vsel %vm469, %v2594, %v2598
      %v2602 = vsel %vm469, %v2596, %v2600
      %v2603 = vmul.f32 %v2591, %v2256
      %v2604 = vmul.f32 %v2592, %v2359
      %v2605 = vmul.f32 %v2601, %v2463
      %v2606 = vmul.f32 %v2602, %v2567
      %v2607 = vadd.f32 %v2603, %v2605
      %v2608 = vadd.f32 %v2604, %v2606
      %s2609 = scalar_lea.vmem %s450, 48
      %2610 = vst [vmem:[%s2609] sm:$0xff] %v2607
      %2611 = vst [vmem:[%s2609 + $0x8] sm:$0xff] %v2608
      %s2612 = smul.u32 4, %s23
      %s2613 = smul.u32 2, %s24
      %p2614 = scmp.lt.s32.totalorder %s22, 1
      %s2615 = scalar_select %p2614, %s22, 1
      %p2616 = scmp.lt.s32.totalorder %s2612, 3
      %s2617 = scalar_select %p2616, %s2612, 3
      %p2618 = scmp.lt.s32.totalorder %s2613, 1
      %s2619 = scalar_select %p2618, %s2613, 1
      %s2620 = smul.addr %s2617, 2
      %s2621 = sadd.s32 %s2619, %s2620
      %s2622 = smul.addr %s2615, 8
      %s2623 = sadd.s32 %s2621, %s2622
      %s2624 = smul.addr %s2623, 8
      %s2625 = scalar_lea.vmem %s4, %s2624
      %s2626 = smul.u32 4, %s23
      %s2627 = smul.u32 2, %s24
      %p2628 = scmp.lt.s32.totalorder %s22, 1
      %s2629 = scalar_select %p2628, %s22, 1
      %p2630 = scmp.lt.s32.totalorder %s2626, 3
      %s2631 = scalar_select %p2630, %s2626, 3
      %p2632 = scmp.lt.s32.totalorder %s2627, 1
      %s2633 = scalar_select %p2632, %s2627, 1
      %s2634 = smul.addr %s2631, 2
      %s2635 = sadd.s32 %s2633, %s2634
      %s2636 = smul.addr %s2629, 8
      %s2637 = sadd.s32 %s2635, %s2636
      %s2638 = smul.addr %s2637, 8
      %s2639 = scalar_lea.vmem %s5, %s2638
      // Predicated region
      $region37: #{rope2d_mixed.1} parent=35 // pred_check
        %p2640 = pneg %p172
      $region38: #{rope2d_mixed.1} parent=35 // pred_check_branch
        %2642 = sbr.rel (%p2640) target = $region40
      $region39: #{rope2d_mixed.1} parent=35 // pred_region
        %s2643 = smul.u32 4, %s23
        %s2644 = smul.u32 2, %s24
      $region40: #{rope2d_mixed.1} parent=35 // pred_fallthru
        _
      // Predicated region
      $region41: #{rope2d_mixed.1} parent=35 // pred_check
        %p2645 = pneg %p202
      $region42: #{rope2d_mixed.1} parent=35 // pred_check_branch
        %2647 = sbr.rel (%p2645) target = $region44
      $region43: #{rope2d_mixed.1} parent=35 // pred_region
        %s2648 = smul.u32 4, %s23
        %s2649 = smul.u32 2, %s24
      $region44: #{rope2d_mixed.1} parent=35 // pred_fallthru
        _
    $region36: #{rope2d_mixed.1} parent=5 // pred_fallthru
      _
    %p2650 = scmp.le.s32.totalorder 2, %s12
    // Predicated region
    $region45: #{rope2d_mixed.1} parent=5 // pred_check
      %p2651 = pneg %p2650
    $region46: #{rope2d_mixed.1} parent=5 // pred_check_branch
      %2653 = sbr.rel (%p2651) target = $region48
    $region47: #{rope2d_mixed.1} parent=5 // pred_region
      %s2654 = ssub.s32 %s12, 2
      // Predicated region
      $region49: #{rope2d_mixed.1} parent=47 // pred_check
        %p2655 = pneg %p178
      $region50: #{rope2d_mixed.1} parent=47 // pred_check_branch
        %2657 = sbr.rel (%p2655) target = $region52
      $region51: #{rope2d_mixed.1} parent=47 // pred_region
        %s2658 = smul.u32 4, %s26
        %s2659 = smul.u32 2, %s27
        %p2660 = scmp.lt.s32.totalorder %s25, 1
        %s2661 = scalar_select %p2660, %s25, 1
        %p2662 = scmp.lt.s32.totalorder %s2658, 3
        %s2663 = scalar_select %p2662, %s2658, 3
        %p2664 = scmp.lt.s32.totalorder %s2659, 1
        %s2665 = scalar_select %p2664, %s2659, 1
        %s2666 = smul.addr %s2663, 2
        %s2667 = sadd.s32 %s2665, %s2666
        %s2668 = smul.addr %s2661, 8
        %s2669 = sadd.s32 %s2667, %s2668
        %s2670 = smul.addr %s2669, 8
        %s2671 = scalar_lea.vmem %s4, %s2670
      $region52: #{rope2d_mixed.1} parent=47 // pred_fallthru
        _
      // Predicated region
      $region53: #{rope2d_mixed.1} parent=47 // pred_check
        %p2672 = pneg %p208
      $region54: #{rope2d_mixed.1} parent=47 // pred_check_branch
        %2674 = sbr.rel (%p2672) target = $region56
      $region55: #{rope2d_mixed.1} parent=47 // pred_region
        %s2675 = smul.u32 4, %s26
        %s2676 = smul.u32 2, %s27
        %p2677 = scmp.lt.s32.totalorder %s25, 1
        %s2678 = scalar_select %p2677, %s25, 1
        %p2679 = scmp.lt.s32.totalorder %s2675, 3
        %s2680 = scalar_select %p2679, %s2675, 3
        %p2681 = scmp.lt.s32.totalorder %s2676, 1
        %s2682 = scalar_select %p2681, %s2676, 1
        %s2683 = smul.addr %s2680, 2
        %s2684 = sadd.s32 %s2682, %s2683
        %s2685 = smul.addr %s2678, 8
        %s2686 = sadd.s32 %s2684, %s2685
        %s2687 = smul.addr %s2686, 8
        %s2688 = scalar_lea.vmem %s5, %s2687
      $region56: #{rope2d_mixed.1} parent=47 // pred_fallthru
        _
    $region48: #{rope2d_mixed.1} parent=5 // pred_fallthru
      _
  $region6: #{rope2d_mixed.1} parent=0 // loop_footer
    %s16 = sadd.s32 1, %s12
  $region7: #{rope2d_mixed.1} parent=0 // loop_footer_branch
    %11 = sbr.rel target = $region3
  $region8: #{rope2d_mixed.1} parent=0 // loop_exit
    _

</llo_original>
